<compile_context>
chip_gen: v7x
topology: tpu7x:2x2x1
jax: 0.10.0
libtpu: 0.0.40
codegen_flags: <defaults>
</compile_context>

<pallas_src>
import functools

import jax
import jax.numpy as jnp
import numpy as np
from jax.experimental import pallas as pl
from jax.experimental.pallas import tpu as pltpu

EPS = 1e-5                      # PyTorch BatchNorm1d default eps
LANE = 128                      # TPU lane width
COMPUTE_DTYPE = jnp.bfloat16    # MXU operand dtype (f32 accumulation/epilogue)


def _round_up(x, m):
    return (x + m - 1) // m * m


def _cdiv(a, b):
    return (a + b - 1) // b


def _pad_axis(a, axis, new_size):
    pad = [(0, 0)] * a.ndim
    pad[axis] = (0, new_size - a.shape[axis])
    return jnp.pad(a, pad)


def _vmem_limit_bytes():
    """Generation-aware scoped-VMEM cap (3/4 of physical, clamped)."""
    default = 48 * 1024 * 1024          # safe on v7x's 64 MiB per-core VMEM
    try:
        info = pltpu.get_tpu_info()
        cap = getattr(info, "vmem_capacity_bytes", None)
        if not cap:
            return default
        return int(min(max(cap * 3 // 4, 32 * 1024 * 1024), 112 * 1024 * 1024))
    except Exception:
        return default


def _pick_batch_tile(N, L, target_rows=512):
    """Rows per grid step ~target_rows (amortize MXU fill/drain + per-step
    overhead), but keep >=2 grid steps for v7x's 2 TCs when that still leaves
    >=128 matmul rows per step."""
    bt = max(1, min(N, _cdiv(target_rows, max(L, 1))))
    while bt > 1 and _cdiv(N, bt) < 2 and (bt // 2) * L >= 128:
        bt //= 2
    return bt


def _weight_spec(shape):
    """Grid-invariant operand: full-block, constant index map, single-buffered
    when the installed Pallas supports pipeline_mode (saves VMEM on v7x)."""
    zeros = (0,) * len(shape)
    index_map = lambda n: zeros
    buffered = getattr(pl, "Buffered", None)
    if buffered is not None:
        try:
            return pl.BlockSpec(shape, index_map, pipeline_mode=buffered(1))
        except TypeError:
            pass
    return pl.BlockSpec(shape, index_map)


# ----------------------------------------------------------------------------
# Fused whole-TCN kernel (one batch tile per grid step, everything in VMEM)
# ----------------------------------------------------------------------------
def _tcn_fused_kernel(*refs, meta):
    """refs = [x_ref,
               per block: (w1, s1, t1, w2, s2, t2[, wd, td]),
               w_fc, b_fc,
               o_ref]

    x_ref : (B, L, C_in_pad) bf16        w1/w2 : (K*C_pad, C_out_pad) bf16
    s*/t* : (1, C_out_pad)  f32          wd    : (C_in_pad, C_out_pad) bf16
    w_fc  : (C_last_pad, NC_pad) f32     b_fc  : (1, NC_pad) f32
    o_ref : (1, B, NC_pad) f32
    """
    f32 = jnp.float32

    idx = 0
    x_ref = refs[idx]; idx += 1
    per_block = []
    for (_, _, has_ds) in meta:
        n = 8 if has_ds else 6
        per_block.append(refs[idx: idx + n]); idx += n
    wfc_ref, bfc_ref = refs[idx], refs[idx + 1]; idx += 2
    o_ref = refs[idx]

    x = x_ref[...]                              # (B, L, C_in_pad) bf16

    def dilated_conv(inp, w_ref, s_ref, t_ref, K, dil):
        # Causal dilated conv == first L outputs of PyTorch's both-sides
        # padded conv (which is all the module keeps after its crop).
        # K per-tap MXU matmuls accumulated in f32; the shift / zero-fill
        # stays in bf16 (no f32 im2col temporaries).
        Bq, Lq, C = inp.shape
        rows = inp.reshape(Bq * Lq, C)
        acc = None
        for j in range(K):
            shift = (K - 1 - j) * dil
            if shift == 0:
                xs = rows
            elif shift >= Lq:
                xs = jnp.zeros_like(rows)
            else:
                xs = jnp.concatenate(
                    [jnp.zeros((Bq, shift, C), inp.dtype),
                     inp[:, :Lq - shift, :]], axis=1).reshape(Bq * Lq, C)
            part = jnp.dot(xs, w_ref[pl.ds(j * C, C), :],
                           preferred_element_type=f32)
            acc = part if acc is None else acc + part
        # Folded conv-bias + eval-mode BatchNorm (f32 epilogue).
        return acc * s_ref[...] + t_ref[...]    # (B*L, C_out_pad) f32

    for (K, dil, has_ds), brefs in zip(meta, per_block):
        if has_ds:
            w1, s1, t1, w2, s2, t2, wd, td = brefs
        else:
            w1, s1, t1, w2, s2, t2 = brefs
        Bq, Lq, C_in = x.shape

        # conv1 -> BN -> ReLU   (dropout is identity at inference)
        h1 = jnp.maximum(dilated_conv(x, w1, s1, t1, K, dil), 0.0)
        h1 = h1.reshape(Bq, Lq, -1).astype(x.dtype)        # single bf16 cast
        # conv2 -> BN -> ReLU
        h2 = jnp.maximum(dilated_conv(h1, w2, s2, t2, K, dil), 0.0)

        # residual (1x1 downsample conv when channel counts differ)
        if has_ds:
            res = (jnp.dot(x.reshape(Bq * Lq, C_in), wd[...],
                           preferred_element_type=f32) + td[...])
        else:
            res = x.reshape(Bq * Lq, C_in).astype(f32)

        x = jnp.maximum(h2 + res, 0.0).reshape(Bq, Lq, -1).astype(x_ref.dtype)

    # Classifier head fused in: last timestep -> Linear (lane-padded).
    B, L, _ = x.shape
    last = x[:, L - 1, :].astype(f32)                       # (B, C_last_pad)
    o_ref[0] = (jnp.dot(last, wfc_ref[...], preferred_element_type=f32)
                + bfc_ref[...])


# ----------------------------------------------------------------------------
# Parameters: raw (PyTorch-layout) init + one-time layout preparation
# ----------------------------------------------------------------------------
def fold_bn(bias, gamma, beta, mean, var):
    """Fold conv bias + eval-mode BatchNorm into a per-channel scale/shift."""
    scale = gamma / jnp.sqrt(var + EPS)
    shift = beta + (bias - mean) * scale
    return scale, shift


def init_tcn_params(key, num_channels, kernel_size, num_classes, in_dim=4):
    def nrm(k, shape, s=0.2):
        return s * jax.random.normal(k, shape, jnp.float32)

    params = []
    for i, out_ch in enumerate(num_channels):
        in_ch = in_dim if i == 0 else num_channels[i - 1]
        dil = 2 ** i
        pad = (kernel_size - 1) * dil
        key, *ks = jax.random.split(key, 13)
        blk = dict(
            dilation=dil,
            padding=pad,
            w1=nrm(ks[0], (out_ch, in_ch, kernel_size)),
            b1=nrm(ks[1], (out_ch,), 0.1),
            g1=1.0 + nrm(ks[2], (out_ch,), 0.1),
            be1=nrm(ks[3], (out_ch,), 0.1),
            m1=nrm(ks[4], (out_ch,), 0.1),
            v1=0.5 + jax.random.uniform(ks[5], (out_ch,), jnp.float32),
            w2=nrm(ks[6], (out_ch, out_ch, kernel_size)),
            b2=nrm(ks[7], (out_ch,), 0.1),
            g2=1.0 + nrm(ks[8], (out_ch,), 0.1),
            be2=nrm(ks[9], (out_ch,), 0.1),
            m2=nrm(ks[10], (out_ch,), 0.1),
            v2=0.5 + jax.random.uniform(ks[11], (out_ch,), jnp.float32),
        )
        if in_ch != out_ch:
            key, kd1, kd2 = jax.random.split(key, 3)
            blk["wd"] = nrm(kd1, (out_ch, in_ch, 1))
            blk["bd"] = nrm(kd2, (out_ch,), 0.1)
        params.append(blk)
    key, kf1, kf2 = jax.random.split(key, 3)
    fc_w = nrm(kf1, (num_classes, num_channels[-1]))
    fc_b = nrm(kf2, (num_classes,), 0.1)
    return params, (fc_w, fc_b)


def prepare_tcn_params(params, fc, in_dim):
    """One-time layout plumbing: fold BN, transpose + per-tap reshape weights,
    pad channels to lane-dense widths, cast MXU operands to bf16."""
    blocks = []
    c_in = in_dim
    for p in params:
        c_out, _, K = p["w1"].shape
        ci_pad = _round_up(c_in, LANE)
        co_pad = _round_up(c_out, LANE)

        def conv_w(w_oik, rows_pad, cols_pad, K=K):
            # (O, I, K) -> (K, I, O) -> pad channels -> (K*I_pad, O_pad), bf16
            w_kio = jnp.transpose(w_oik, (2, 1, 0))
            w_kio = _pad_axis(_pad_axis(w_kio, 1, rows_pad), 2, cols_pad)
            return w_kio.reshape(K * rows_pad, cols_pad).astype(COMPUTE_DTYPE)

        def affine(scale, shift, cols_pad):
            return (_pad_axis(scale.reshape(1, -1), 1, cols_pad),
                    _pad_axis(shift.reshape(1, -1), 1, cols_pad))

        s1, t1 = fold_bn(p["b1"], p["g1"], p["be1"], p["m1"], p["v1"])
        s2, t2 = fold_bn(p["b2"], p["g2"], p["be2"], p["m2"], p["v2"])
        s1, t1 = affine(s1, t1, co_pad)
        s2, t2 = affine(s2, t2, co_pad)

        blk = dict(
            K=K, dilation=p["dilation"], ci_pad=ci_pad, co_pad=co_pad,
            w1=conv_w(p["w1"], ci_pad, co_pad), s1=s1, t1=t1,
            w2=conv_w(p["w2"], co_pad, co_pad), s2=s2, t2=t2,
        )
        if "wd" in p:
            wd = jnp.transpose(p["wd"][:, :, 0])          # (I, O)
            wd = _pad_axis(_pad_axis(wd, 0, ci_pad), 1, co_pad)
            blk["wd"] = wd.astype(COMPUTE_DTYPE)
            blk["td"] = _pad_axis(p["bd"].reshape(1, -1), 1, co_pad)
        blocks.append(blk)
        c_in = c_out

    fc_w, fc_b = fc
    num_classes, c_last = fc_w.shape
    c_last_pad = _round_up(c_last, LANE)
    nc_pad = _round_up(num_classes, LANE)
    head = dict(
        w=_pad_axis(_pad_axis(fc_w.T, 0, c_last_pad), 1, nc_pad).astype(jnp.float32),
        b=_pad_axis(fc_b.reshape(1, -1), 1, nc_pad).astype(jnp.float32),
        num_classes=num_classes,
    )
    return blocks, head


# ----------------------------------------------------------------------------
# Forward (single fused pallas_call)
# ----------------------------------------------------------------------------
def tcn_forward(x_ncl, blocks, head, *, batch_tile=None):
    """x_ncl: (N, C_in, L) float32 (PyTorch NCL layout) -> (N, num_classes)."""
    N, C_in, L = x_ncl.shape
    ci_pad = blocks[0]["ci_pad"]
    nc_pad = head["w"].shape[1]

    bt = batch_tile or _pick_batch_tile(N, L)
    n_tiles = _cdiv(N, bt)
    n_pad = n_tiles * bt

    # NCL -> NLC, lane-pad input channels, cast MXU operand to bf16, pad batch.
    x = jnp.transpose(x_ncl, (0, 2, 1))
    x = _pad_axis(x, 2, ci_pad).astype(COMPUTE_DTYPE)
    if n_pad != N:
        x = _pad_axis(x, 0, n_pad)

    inputs = [x]
    in_specs = [pl.BlockSpec((bt, L, ci_pad), lambda n: (n, 0, 0))]
    meta = []
    for bp in blocks:
        names = ["w1", "s1", "t1", "w2", "s2", "t2"]
        if "wd" in bp:
            names += ["wd", "td"]
        for nm in names:
            inputs.append(bp[nm])
            in_specs.append(_weight_spec(bp[nm].shape))
        meta.append((bp["K"], bp["dilation"], "wd" in bp))
    inputs += [head["w"], head["b"]]
    in_specs += [_weight_spec(head["w"].shape), _weight_spec(head["b"].shape)]

    kernel = functools.partial(_tcn_fused_kernel, meta=tuple(meta))

    logits = pl.pallas_call(
        kernel,
        out_shape=jax.ShapeDtypeStruct((n_tiles, bt, nc_pad), jnp.float32),
        grid=(n_tiles,),
        in_specs=in_specs,
        out_specs=pl.BlockSpec((1, bt, nc_pad), lambda n: (n, 0, 0)),
        compiler_params=pltpu.CompilerParams(
            dimension_semantics=("parallel",),
            vmem_limit_bytes=_vmem_limit_bytes(),
        ),
    )(*inputs)

    return logits.reshape(n_pad, nc_pad)[:N, : head["num_classes"]]


# ----------------------------------------------------------------------------
# Pure-JAX reference (PyTorch NCL semantics, f32) for correctness check
# ----------------------------------------------------------------------------
def _ref_conv1d(x, w, b, dil, pad):
    out = jax.lax.conv_general_dilated(
        x, w, window_strides=(1,), padding=[(pad, pad)],
        rhs_dilation=(dil,), dimension_numbers=("NCH", "OIH", "NCH"),
    )
    return out + b[None, :, None]


def _ref_bn(x, g, be, m, v):
    return (x - m[None, :, None]) / jnp.sqrt(v[None, :, None] + EPS) * g[
        None, :, None
    ] + be[None, :, None]


def ref_forward(x_ncl, params, fc):
    x = x_ncl
    for p in params:
        residual = x
        out = jax.nn.relu(
            _ref_bn(
                _ref_conv1d(x, p["w1"], p["b1"], p["dilation"], p["padding"]),
                p["g1"], p["be1"], p["m1"], p["v1"],
            )
        )
        out = jax.nn.relu(
            _ref_bn(
                _ref_conv1d(out, p["w2"], p["b2"], p["dilation"], p["padding"]),
                p["g2"], p["be2"], p["m2"], p["v2"],
            )
        )
        if "wd" in p:
            residual = _ref_conv1d(x, p["wd"], p["bd"], 1, 0)
        out = out[:, :, : residual.shape[2]]
        x = jax.nn.relu(out + residual)
    last = x[:, :, -1]
    fc_w, fc_b = fc
    return last @ fc_w.T + fc_b


if __name__ == "__main__":
    key = jax.random.PRNGKey(0)
    k_x, k_p = jax.random.split(key)

    num_channels = [8, 16]
    kernel_size = 3
    num_classes = 5
    N, C_in, L = 2, 4, 16  # PyTorch TCN hardcodes 4 input channels

    x = jax.random.normal(k_x, (N, C_in, L), jnp.float32)
    params, fc = init_tcn_params(k_p, num_channels, kernel_size, num_classes,
                                 in_dim=C_in)
    blocks, head = prepare_tcn_params(params, fc, in_dim=C_in)

    fwd = jax.jit(lambda xx: tcn_forward(xx, blocks, head))
    out = jax.block_until_ready(fwd(x))
    ref = jax.block_until_ready(ref_forward(x, params, fc))

    assert out.shape == (N, num_classes)
    # bf16 MXU operands with f32 accumulation -> loosened tolerance vs f32 ref.
    np.testing.assert_allclose(np.asarray(out), np.asarray(ref),
                               atol=5e-2, rtol=5e-2)
    print("KERNEL_OK")
</pallas_src>

<mosaic_0001>
module attributes {stable_mosaic.version = 11 : i64} {
  func.func @_tcn_fused_kernel(%arg0: i32, %arg1: memref<2x16x128xbf16, #tpu.memory_space<vmem>>, %arg2: memref<384x128xbf16, #tpu.memory_space<vmem>>, %arg3: memref<1x128xf32, #tpu.memory_space<vmem>>, %arg4: memref<1x128xf32, #tpu.memory_space<vmem>>, %arg5: memref<384x128xbf16, #tpu.memory_space<vmem>>, %arg6: memref<1x128xf32, #tpu.memory_space<vmem>>, %arg7: memref<1x128xf32, #tpu.memory_space<vmem>>, %arg8: memref<128x128xbf16, #tpu.memory_space<vmem>>, %arg9: memref<1x128xf32, #tpu.memory_space<vmem>>, %arg10: memref<384x128xbf16, #tpu.memory_space<vmem>>, %arg11: memref<1x128xf32, #tpu.memory_space<vmem>>, %arg12: memref<1x128xf32, #tpu.memory_space<vmem>>, %arg13: memref<384x128xbf16, #tpu.memory_space<vmem>>, %arg14: memref<1x128xf32, #tpu.memory_space<vmem>>, %arg15: memref<1x128xf32, #tpu.memory_space<vmem>>, %arg16: memref<128x128xbf16, #tpu.memory_space<vmem>>, %arg17: memref<1x128xf32, #tpu.memory_space<vmem>>, %arg18: memref<128x128xf32, #tpu.memory_space<vmem>>, %arg19: memref<1x128xf32, #tpu.memory_space<vmem>>, %arg20: memref<1x2x128xf32, #tpu.memory_space<vmem>>) attributes {dimension_semantics = [#tpu.dimension_semantics<parallel>], iteration_bounds = array<i64: 1>, scalar_prefetch = 0 : i64, scratch_operands = 0 : i64, tpu.core_type = #tpu.core_type<tc>, window_params = [{transform_indices = @transform_0, window_bounds = array<i64: 2, 16, 128>}, {pipeline_mode = #tpu.pipeline_mode<synchronous>, transform_indices = @transform_1, window_bounds = array<i64: 384, 128>}, {pipeline_mode = #tpu.pipeline_mode<synchronous>, transform_indices = @transform_2, window_bounds = array<i64: 1, 128>}, {pipeline_mode = #tpu.pipeline_mode<synchronous>, transform_indices = @transform_3, window_bounds = array<i64: 1, 128>}, {pipeline_mode = #tpu.pipeline_mode<synchronous>, transform_indices = @transform_4, window_bounds = array<i64: 384, 128>}, {pipeline_mode = #tpu.pipeline_mode<synchronous>, transform_indices = @transform_5, window_bounds = array<i64: 1, 128>}, {pipeline_mode = #tpu.pipeline_mode<synchronous>, transform_indices = @transform_6, window_bounds = array<i64: 1, 128>}, {pipeline_mode = #tpu.pipeline_mode<synchronous>, transform_indices = @transform_7, window_bounds = array<i64: 128, 128>}, {pipeline_mode = #tpu.pipeline_mode<synchronous>, transform_indices = @transform_8, window_bounds = array<i64: 1, 128>}, {pipeline_mode = #tpu.pipeline_mode<synchronous>, transform_indices = @transform_9, window_bounds = array<i64: 384, 128>}, {pipeline_mode = #tpu.pipeline_mode<synchronous>, transform_indices = @transform_10, window_bounds = array<i64: 1, 128>}, {pipeline_mode = #tpu.pipeline_mode<synchronous>, transform_indices = @transform_11, window_bounds = array<i64: 1, 128>}, {pipeline_mode = #tpu.pipeline_mode<synchronous>, transform_indices = @transform_12, window_bounds = array<i64: 384, 128>}, {pipeline_mode = #tpu.pipeline_mode<synchronous>, transform_indices = @transform_13, window_bounds = array<i64: 1, 128>}, {pipeline_mode = #tpu.pipeline_mode<synchronous>, transform_indices = @transform_14, window_bounds = array<i64: 1, 128>}, {pipeline_mode = #tpu.pipeline_mode<synchronous>, transform_indices = @transform_15, window_bounds = array<i64: 128, 128>}, {pipeline_mode = #tpu.pipeline_mode<synchronous>, transform_indices = @transform_16, window_bounds = array<i64: 1, 128>}, {pipeline_mode = #tpu.pipeline_mode<synchronous>, transform_indices = @transform_17, window_bounds = array<i64: 128, 128>}, {pipeline_mode = #tpu.pipeline_mode<synchronous>, transform_indices = @transform_18, window_bounds = array<i64: 1, 128>}, {transform_indices = @transform_19, window_bounds = array<i64: 1, 2, 128>}]} {
    %c0 = arith.constant 0 : index
    %c0_0 = arith.constant 0 : index
    %c0_1 = arith.constant 0 : index
    %0 = vector.load %arg1[%c0, %c0_0, %c0_1] : memref<2x16x128xbf16, #tpu.memory_space<vmem>>, vector<2x16x128xbf16>
    %1 = vector.shape_cast %0 : vector<2x16x128xbf16> to vector<32x128xbf16>
    %cst = arith.constant 0.000000e+00 : bf16
    %2 = vector.broadcast %cst : bf16 to vector<2x2x128xbf16>
    %3 = vector.extract_strided_slice %0 {offsets = [0, 0, 0], sizes = [2, 14, 128], strides = [1, 1, 1]} : vector<2x16x128xbf16> to vector<2x14x128xbf16>
    %4 = tpu.concatenate %2, %3 in 1 : vector<2x2x128xbf16>, vector<2x14x128xbf16> -> vector<2x16x128xbf16>
    %5 = vector.shape_cast %4 : vector<2x16x128xbf16> to vector<32x128xbf16>
    %c0_2 = arith.constant 0 : index
    %c0_3 = arith.constant 0 : index
    %6 = vector.load %arg2[%c0_2, %c0_3] : memref<384x128xbf16, #tpu.memory_space<vmem>>, vector<128x128xbf16>
    %cst_4 = arith.constant dense<0.000000e+00> : vector<32x128xf32>
    %7 = tpu.matmul %5, %6, %cst_4 {dimension_numbers = #tpu.dot_dimension_numbers<[1], [0], [0], [1], [0, 0, 1, 1], [], []>} : vector<32x128xbf16>, vector<128x128xbf16>, vector<32x128xf32> -> vector<32x128xf32>
    %cst_5 = arith.constant 0.000000e+00 : bf16
    %8 = vector.broadcast %cst_5 : bf16 to vector<2x1x128xbf16>
    %9 = vector.extract_strided_slice %0 {offsets = [0, 0, 0], sizes = [2, 15, 128], strides = [1, 1, 1]} : vector<2x16x128xbf16> to vector<2x15x128xbf16>
    %10 = tpu.concatenate %8, %9 in 1 : vector<2x1x128xbf16>, vector<2x15x128xbf16> -> vector<2x16x128xbf16>
    %11 = vector.shape_cast %10 : vector<2x16x128xbf16> to vector<32x128xbf16>
    %c128 = arith.constant 128 : index
    %c0_6 = arith.constant 0 : index
    %12 = vector.load %arg2[%c128, %c0_6] : memref<384x128xbf16, #tpu.memory_space<vmem>>, vector<128x128xbf16>
    %cst_7 = arith.constant dense<0.000000e+00> : vector<32x128xf32>
    %13 = tpu.matmul %11, %12, %cst_7 {dimension_numbers = #tpu.dot_dimension_numbers<[1], [0], [0], [1], [0, 0, 1, 1], [], []>} : vector<32x128xbf16>, vector<128x128xbf16>, vector<32x128xf32> -> vector<32x128xf32>
    %14 = arith.addf %7, %13 : vector<32x128xf32>
    %c256 = arith.constant 256 : index
    %c0_8 = arith.constant 0 : index
    %15 = vector.load %arg2[%c256, %c0_8] : memref<384x128xbf16, #tpu.memory_space<vmem>>, vector<128x128xbf16>
    %cst_9 = arith.constant dense<0.000000e+00> : vector<32x128xf32>
    %16 = tpu.matmul %1, %15, %cst_9 {dimension_numbers = #tpu.dot_dimension_numbers<[1], [0], [0], [1], [0, 0, 1, 1], [], []>} : vector<32x128xbf16>, vector<128x128xbf16>, vector<32x128xf32> -> vector<32x128xf32>
    %17 = arith.addf %14, %16 : vector<32x128xf32>
    %c0_10 = arith.constant 0 : index
    %c0_11 = arith.constant 0 : index
    %18 = vector.load %arg3[%c0_10, %c0_11] : memref<1x128xf32, #tpu.memory_space<vmem>>, vector<1x128xf32>
    %19 = vector.broadcast %18 : vector<1x128xf32> to vector<32x128xf32>
    %20 = arith.mulf %17, %19 : vector<32x128xf32>
    %c0_12 = arith.constant 0 : index
    %c0_13 = arith.constant 0 : index
    %21 = vector.load %arg4[%c0_12, %c0_13] : memref<1x128xf32, #tpu.memory_space<vmem>>, vector<1x128xf32>
    %22 = vector.broadcast %21 : vector<1x128xf32> to vector<32x128xf32>
    %23 = arith.addf %20, %22 : vector<32x128xf32>
    %cst_14 = arith.constant 0.000000e+00 : f32
    %24 = vector.broadcast %cst_14 : f32 to vector<32x128xf32>
    %25 = arith.maximumf %23, %24 : vector<32x128xf32>
    %26 = vector.shape_cast %25 : vector<32x128xf32> to vector<2x16x128xf32>
    %27 = arith.truncf %26 : vector<2x16x128xf32> to vector<2x16x128xbf16>
    %28 = vector.shape_cast %27 : vector<2x16x128xbf16> to vector<32x128xbf16>
    %cst_15 = arith.constant 0.000000e+00 : bf16
    %29 = vector.broadcast %cst_15 : bf16 to vector<2x2x128xbf16>
    %30 = vector.extract_strided_slice %27 {offsets = [0, 0, 0], sizes = [2, 14, 128], strides = [1, 1, 1]} : vector<2x16x128xbf16> to vector<2x14x128xbf16>
    %31 = tpu.concatenate %29, %30 in 1 : vector<2x2x128xbf16>, vector<2x14x128xbf16> -> vector<2x16x128xbf16>
    %32 = vector.shape_cast %31 : vector<2x16x128xbf16> to vector<32x128xbf16>
    %c0_16 = arith.constant 0 : index
    %c0_17 = arith.constant 0 : index
    %33 = vector.load %arg5[%c0_16, %c0_17] : memref<384x128xbf16, #tpu.memory_space<vmem>>, vector<128x128xbf16>
    %cst_18 = arith.constant dense<0.000000e+00> : vector<32x128xf32>
    %34 = tpu.matmul %32, %33, %cst_18 {dimension_numbers = #tpu.dot_dimension_numbers<[1], [0], [0], [1], [0, 0, 1, 1], [], []>} : vector<32x128xbf16>, vector<128x128xbf16>, vector<32x128xf32> -> vector<32x128xf32>
    %cst_19 = arith.constant 0.000000e+00 : bf16
    %35 = vector.broadcast %cst_19 : bf16 to vector<2x1x128xbf16>
    %36 = vector.extract_strided_slice %27 {offsets = [0, 0, 0], sizes = [2, 15, 128], strides = [1, 1, 1]} : vector<2x16x128xbf16> to vector<2x15x128xbf16>
    %37 = tpu.concatenate %35, %36 in 1 : vector<2x1x128xbf16>, vector<2x15x128xbf16> -> vector<2x16x128xbf16>
    %38 = vector.shape_cast %37 : vector<2x16x128xbf16> to vector<32x128xbf16>
    %c128_20 = arith.constant 128 : index
    %c0_21 = arith.constant 0 : index
    %39 = vector.load %arg5[%c128_20, %c0_21] : memref<384x128xbf16, #tpu.memory_space<vmem>>, vector<128x128xbf16>
    %cst_22 = arith.constant dense<0.000000e+00> : vector<32x128xf32>
    %40 = tpu.matmul %38, %39, %cst_22 {dimension_numbers = #tpu.dot_dimension_numbers<[1], [0], [0], [1], [0, 0, 1, 1], [], []>} : vector<32x128xbf16>, vector<128x128xbf16>, vector<32x128xf32> -> vector<32x128xf32>
    %41 = arith.addf %34, %40 : vector<32x128xf32>
    %c256_23 = arith.constant 256 : index
    %c0_24 = arith.constant 0 : index
    %42 = vector.load %arg5[%c256_23, %c0_24] : memref<384x128xbf16, #tpu.memory_space<vmem>>, vector<128x128xbf16>
    %cst_25 = arith.constant dense<0.000000e+00> : vector<32x128xf32>
    %43 = tpu.matmul %28, %42, %cst_25 {dimension_numbers = #tpu.dot_dimension_numbers<[1], [0], [0], [1], [0, 0, 1, 1], [], []>} : vector<32x128xbf16>, vector<128x128xbf16>, vector<32x128xf32> -> vector<32x128xf32>
    %44 = arith.addf %41, %43 : vector<32x128xf32>
    %c0_26 = arith.constant 0 : index
    %c0_27 = arith.constant 0 : index
    %45 = vector.load %arg6[%c0_26, %c0_27] : memref<1x128xf32, #tpu.memory_space<vmem>>, vector<1x128xf32>
    %46 = vector.broadcast %45 : vector<1x128xf32> to vector<32x128xf32>
    %47 = arith.mulf %44, %46 : vector<32x128xf32>
    %c0_28 = arith.constant 0 : index
    %c0_29 = arith.constant 0 : index
    %48 = vector.load %arg7[%c0_28, %c0_29] : memref<1x128xf32, #tpu.memory_space<vmem>>, vector<1x128xf32>
    %49 = vector.broadcast %48 : vector<1x128xf32> to vector<32x128xf32>
    %50 = arith.addf %47, %49 : vector<32x128xf32>
    %cst_30 = arith.constant 0.000000e+00 : f32
    %51 = vector.broadcast %cst_30 : f32 to vector<32x128xf32>
    %52 = arith.maximumf %50, %51 : vector<32x128xf32>
    %53 = vector.shape_cast %0 : vector<2x16x128xbf16> to vector<32x128xbf16>
    %c0_31 = arith.constant 0 : index
    %c0_32 = arith.constant 0 : index
    %54 = vector.load %arg8[%c0_31, %c0_32] : memref<128x128xbf16, #tpu.memory_space<vmem>>, vector<128x128xbf16>
    %cst_33 = arith.constant dense<0.000000e+00> : vector<32x128xf32>
    %55 = tpu.matmul %53, %54, %cst_33 {dimension_numbers = #tpu.dot_dimension_numbers<[1], [0], [0], [1], [0, 0, 1, 1], [], []>} : vector<32x128xbf16>, vector<128x128xbf16>, vector<32x128xf32> -> vector<32x128xf32>
    %c0_34 = arith.constant 0 : index
    %c0_35 = arith.constant 0 : index
    %56 = vector.load %arg9[%c0_34, %c0_35] : memref<1x128xf32, #tpu.memory_space<vmem>>, vector<1x128xf32>
    %57 = vector.broadcast %56 : vector<1x128xf32> to vector<32x128xf32>
    %58 = arith.addf %55, %57 : vector<32x128xf32>
    %59 = arith.addf %52, %58 : vector<32x128xf32>
    %cst_36 = arith.constant 0.000000e+00 : f32
    %60 = vector.broadcast %cst_36 : f32 to vector<32x128xf32>
    %61 = arith.maximumf %59, %60 : vector<32x128xf32>
    %62 = vector.shape_cast %61 : vector<32x128xf32> to vector<2x16x128xf32>
    %63 = arith.truncf %62 : vector<2x16x128xf32> to vector<2x16x128xbf16>
    %64 = vector.shape_cast %63 : vector<2x16x128xbf16> to vector<32x128xbf16>
    %cst_37 = arith.constant 0.000000e+00 : bf16
    %65 = vector.broadcast %cst_37 : bf16 to vector<2x4x128xbf16>
    %66 = vector.extract_strided_slice %63 {offsets = [0, 0, 0], sizes = [2, 12, 128], strides = [1, 1, 1]} : vector<2x16x128xbf16> to vector<2x12x128xbf16>
    %67 = tpu.concatenate %65, %66 in 1 : vector<2x4x128xbf16>, vector<2x12x128xbf16> -> vector<2x16x128xbf16>
    %68 = vector.shape_cast %67 : vector<2x16x128xbf16> to vector<32x128xbf16>
    %c0_38 = arith.constant 0 : index
    %c0_39 = arith.constant 0 : index
    %69 = vector.load %arg10[%c0_38, %c0_39] : memref<384x128xbf16, #tpu.memory_space<vmem>>, vector<128x128xbf16>
    %cst_40 = arith.constant dense<0.000000e+00> : vector<32x128xf32>
    %70 = tpu.matmul %68, %69, %cst_40 {dimension_numbers = #tpu.dot_dimension_numbers<[1], [0], [0], [1], [0, 0, 1, 1], [], []>} : vector<32x128xbf16>, vector<128x128xbf16>, vector<32x128xf32> -> vector<32x128xf32>
    %cst_41 = arith.constant 0.000000e+00 : bf16
    %71 = vector.broadcast %cst_41 : bf16 to vector<2x2x128xbf16>
    %72 = vector.extract_strided_slice %63 {offsets = [0, 0, 0], sizes = [2, 14, 128], strides = [1, 1, 1]} : vector<2x16x128xbf16> to vector<2x14x128xbf16>
    %73 = tpu.concatenate %71, %72 in 1 : vector<2x2x128xbf16>, vector<2x14x128xbf16> -> vector<2x16x128xbf16>
    %74 = vector.shape_cast %73 : vector<2x16x128xbf16> to vector<32x128xbf16>
    %c128_42 = arith.constant 128 : index
    %c0_43 = arith.constant 0 : index
    %75 = vector.load %arg10[%c128_42, %c0_43] : memref<384x128xbf16, #tpu.memory_space<vmem>>, vector<128x128xbf16>
    %cst_44 = arith.constant dense<0.000000e+00> : vector<32x128xf32>
    %76 = tpu.matmul %74, %75, %cst_44 {dimension_numbers = #tpu.dot_dimension_numbers<[1], [0], [0], [1], [0, 0, 1, 1], [], []>} : vector<32x128xbf16>, vector<128x128xbf16>, vector<32x128xf32> -> vector<32x128xf32>
    %77 = arith.addf %70, %76 : vector<32x128xf32>
    %c256_45 = arith.constant 256 : index
    %c0_46 = arith.constant 0 : index
    %78 = vector.load %arg10[%c256_45, %c0_46] : memref<384x128xbf16, #tpu.memory_space<vmem>>, vector<128x128xbf16>
    %cst_47 = arith.constant dense<0.000000e+00> : vector<32x128xf32>
    %79 = tpu.matmul %64, %78, %cst_47 {dimension_numbers = #tpu.dot_dimension_numbers<[1], [0], [0], [1], [0, 0, 1, 1], [], []>} : vector<32x128xbf16>, vector<128x128xbf16>, vector<32x128xf32> -> vector<32x128xf32>
    %80 = arith.addf %77, %79 : vector<32x128xf32>
    %c0_48 = arith.constant 0 : index
    %c0_49 = arith.constant 0 : index
    %81 = vector.load %arg11[%c0_48, %c0_49] : memref<1x128xf32, #tpu.memory_space<vmem>>, vector<1x128xf32>
    %82 = vector.broadcast %81 : vector<1x128xf32> to vector<32x128xf32>
    %83 = arith.mulf %80, %82 : vector<32x128xf32>
    %c0_50 = arith.constant 0 : index
    %c0_51 = arith.constant 0 : index
    %84 = vector.load %arg12[%c0_50, %c0_51] : memref<1x128xf32, #tpu.memory_space<vmem>>, vector<1x128xf32>
    %85 = vector.broadcast %84 : vector<1x128xf32> to vector<32x128xf32>
    %86 = arith.addf %83, %85 : vector<32x128xf32>
    %cst_52 = arith.constant 0.000000e+00 : f32
    %87 = vector.broadcast %cst_52 : f32 to vector<32x128xf32>
    %88 = arith.maximumf %86, %87 : vector<32x128xf32>
    %89 = vector.shape_cast %88 : vector<32x128xf32> to vector<2x16x128xf32>
    %90 = arith.truncf %89 : vector<2x16x128xf32> to vector<2x16x128xbf16>
    %91 = vector.shape_cast %90 : vector<2x16x128xbf16> to vector<32x128xbf16>
    %cst_53 = arith.constant 0.000000e+00 : bf16
    %92 = vector.broadcast %cst_53 : bf16 to vector<2x4x128xbf16>
    %93 = vector.extract_strided_slice %90 {offsets = [0, 0, 0], sizes = [2, 12, 128], strides = [1, 1, 1]} : vector<2x16x128xbf16> to vector<2x12x128xbf16>
    %94 = tpu.concatenate %92, %93 in 1 : vector<2x4x128xbf16>, vector<2x12x128xbf16> -> vector<2x16x128xbf16>
    %95 = vector.shape_cast %94 : vector<2x16x128xbf16> to vector<32x128xbf16>
    %c0_54 = arith.constant 0 : index
    %c0_55 = arith.constant 0 : index
    %96 = vector.load %arg13[%c0_54, %c0_55] : memref<384x128xbf16, #tpu.memory_space<vmem>>, vector<128x128xbf16>
    %cst_56 = arith.constant dense<0.000000e+00> : vector<32x128xf32>
    %97 = tpu.matmul %95, %96, %cst_56 {dimension_numbers = #tpu.dot_dimension_numbers<[1], [0], [0], [1], [0, 0, 1, 1], [], []>} : vector<32x128xbf16>, vector<128x128xbf16>, vector<32x128xf32> -> vector<32x128xf32>
    %cst_57 = arith.constant 0.000000e+00 : bf16
    %98 = vector.broadcast %cst_57 : bf16 to vector<2x2x128xbf16>
    %99 = vector.extract_strided_slice %90 {offsets = [0, 0, 0], sizes = [2, 14, 128], strides = [1, 1, 1]} : vector<2x16x128xbf16> to vector<2x14x128xbf16>
    %100 = tpu.concatenate %98, %99 in 1 : vector<2x2x128xbf16>, vector<2x14x128xbf16> -> vector<2x16x128xbf16>
    %101 = vector.shape_cast %100 : vector<2x16x128xbf16> to vector<32x128xbf16>
    %c128_58 = arith.constant 128 : index
    %c0_59 = arith.constant 0 : index
    %102 = vector.load %arg13[%c128_58, %c0_59] : memref<384x128xbf16, #tpu.memory_space<vmem>>, vector<128x128xbf16>
    %cst_60 = arith.constant dense<0.000000e+00> : vector<32x128xf32>
    %103 = tpu.matmul %101, %102, %cst_60 {dimension_numbers = #tpu.dot_dimension_numbers<[1], [0], [0], [1], [0, 0, 1, 1], [], []>} : vector<32x128xbf16>, vector<128x128xbf16>, vector<32x128xf32> -> vector<32x128xf32>
    %104 = arith.addf %97, %103 : vector<32x128xf32>
    %c256_61 = arith.constant 256 : index
    %c0_62 = arith.constant 0 : index
    %105 = vector.load %arg13[%c256_61, %c0_62] : memref<384x128xbf16, #tpu.memory_space<vmem>>, vector<128x128xbf16>
    %cst_63 = arith.constant dense<0.000000e+00> : vector<32x128xf32>
    %106 = tpu.matmul %91, %105, %cst_63 {dimension_numbers = #tpu.dot_dimension_numbers<[1], [0], [0], [1], [0, 0, 1, 1], [], []>} : vector<32x128xbf16>, vector<128x128xbf16>, vector<32x128xf32> -> vector<32x128xf32>
    %107 = arith.addf %104, %106 : vector<32x128xf32>
    %c0_64 = arith.constant 0 : index
    %c0_65 = arith.constant 0 : index
    %108 = vector.load %arg14[%c0_64, %c0_65] : memref<1x128xf32, #tpu.memory_space<vmem>>, vector<1x128xf32>
    %109 = vector.broadcast %108 : vector<1x128xf32> to vector<32x128xf32>
    %110 = arith.mulf %107, %109 : vector<32x128xf32>
    %c0_66 = arith.constant 0 : index
    %c0_67 = arith.constant 0 : index
    %111 = vector.load %arg15[%c0_66, %c0_67] : memref<1x128xf32, #tpu.memory_space<vmem>>, vector<1x128xf32>
    %112 = vector.broadcast %111 : vector<1x128xf32> to vector<32x128xf32>
    %113 = arith.addf %110, %112 : vector<32x128xf32>
    %cst_68 = arith.constant 0.000000e+00 : f32
    %114 = vector.broadcast %cst_68 : f32 to vector<32x128xf32>
    %115 = arith.maximumf %113, %114 : vector<32x128xf32>
    %116 = vector.shape_cast %63 : vector<2x16x128xbf16> to vector<32x128xbf16>
    %c0_69 = arith.constant 0 : index
    %c0_70 = arith.constant 0 : index
    %117 = vector.load %arg16[%c0_69, %c0_70] : memref<128x128xbf16, #tpu.memory_space<vmem>>, vector<128x128xbf16>
    %cst_71 = arith.constant dense<0.000000e+00> : vector<32x128xf32>
    %118 = tpu.matmul %116, %117, %cst_71 {dimension_numbers = #tpu.dot_dimension_numbers<[1], [0], [0], [1], [0, 0, 1, 1], [], []>} : vector<32x128xbf16>, vector<128x128xbf16>, vector<32x128xf32> -> vector<32x128xf32>
    %c0_72 = arith.constant 0 : index
    %c0_73 = arith.constant 0 : index
    %119 = vector.load %arg17[%c0_72, %c0_73] : memref<1x128xf32, #tpu.memory_space<vmem>>, vector<1x128xf32>
    %120 = vector.broadcast %119 : vector<1x128xf32> to vector<32x128xf32>
    %121 = arith.addf %118, %120 : vector<32x128xf32>
    %122 = arith.addf %115, %121 : vector<32x128xf32>
    %cst_74 = arith.constant 0.000000e+00 : f32
    %123 = vector.broadcast %cst_74 : f32 to vector<32x128xf32>
    %124 = arith.maximumf %122, %123 : vector<32x128xf32>
    %125 = vector.shape_cast %124 : vector<32x128xf32> to vector<2x16x128xf32>
    %126 = arith.truncf %125 : vector<2x16x128xf32> to vector<2x16x128xbf16>
    %127 = vector.extract_strided_slice %126 {offsets = [0, 15, 0], sizes = [2, 1, 128], strides = [1, 1, 1]} : vector<2x16x128xbf16> to vector<2x1x128xbf16>
    %128 = vector.shape_cast %127 : vector<2x1x128xbf16> to vector<2x128xbf16>
    %129 = arith.extf %128 : vector<2x128xbf16> to vector<2x128xf32>
    %c0_75 = arith.constant 0 : index
    %c0_76 = arith.constant 0 : index
    %130 = vector.load %arg18[%c0_75, %c0_76] : memref<128x128xf32, #tpu.memory_space<vmem>>, vector<128x128xf32>
    %cst_77 = arith.constant dense<0.000000e+00> : vector<2x128xf32>
    %131 = tpu.matmul %129, %130, %cst_77 {dimension_numbers = #tpu.dot_dimension_numbers<[1], [0], [0], [1], [0, 0, 1, 1], [], []>} : vector<2x128xf32>, vector<128x128xf32>, vector<2x128xf32> -> vector<2x128xf32>
    %c0_78 = arith.constant 0 : index
    %c0_79 = arith.constant 0 : index
    %132 = vector.load %arg19[%c0_78, %c0_79] : memref<1x128xf32, #tpu.memory_space<vmem>>, vector<1x128xf32>
    %133 = vector.broadcast %132 : vector<1x128xf32> to vector<2x128xf32>
    %134 = arith.addf %131, %133 : vector<2x128xf32>
    %c0_80 = arith.constant 0 : index
    %c0_81 = arith.constant 0 : index
    %c0_82 = arith.constant 0 : index
    %135 = vector.load %arg20[%c0_80, %c0_81, %c0_82] : memref<1x2x128xf32, #tpu.memory_space<vmem>>, vector<1x2x128xf32>
    %136 = vector.shape_cast %135 : vector<1x2x128xf32> to vector<2x128xf32>
    %137 = vector.shape_cast %134 : vector<2x128xf32> to vector<1x2x128xf32>
    tpu.vector_store %arg20[%c0_80, %c0_81, %c0_82], %137 {strides = array<i32>} : memref<1x2x128xf32, #tpu.memory_space<vmem>>, vector<1x2x128xf32>,
    return
  }
  func.func @transform_0(%arg0: i32) -> (i32, i32, i32) {
    %c0_i32 = arith.constant 0 : i32
    %c0_i32_0 = arith.constant 0 : i32
    %c0_i32_1 = arith.constant 0 : i32
    return %arg0, %c0_i32, %c0_i32_0 : i32, i32, i32
  }
  func.func @transform_1(%arg0: i32) -> (i32, i32) {
    %c0_i32 = arith.constant 0 : i32
    %c0_i32_0 = arith.constant 0 : i32
    %c0_i32_1 = arith.constant 0 : i32
    return %c0_i32, %c0_i32_0 : i32, i32
  }
  func.func @transform_2(%arg0: i32) -> (i32, i32) {
    %c0_i32 = arith.constant 0 : i32
    %c0_i32_0 = arith.constant 0 : i32
    %c0_i32_1 = arith.constant 0 : i32
    return %c0_i32, %c0_i32_0 : i32, i32
  }
  func.func @transform_3(%arg0: i32) -> (i32, i32) {
    %c0_i32 = arith.constant 0 : i32
    %c0_i32_0 = arith.constant 0 : i32
    %c0_i32_1 = arith.constant 0 : i32
    return %c0_i32, %c0_i32_0 : i32, i32
  }
  func.func @transform_4(%arg0: i32) -> (i32, i32) {
    %c0_i32 = arith.constant 0 : i32
    %c0_i32_0 = arith.constant 0 : i32
    %c0_i32_1 = arith.constant 0 : i32
    return %c0_i32, %c0_i32_0 : i32, i32
  }
  func.func @transform_5(%arg0: i32) -> (i32, i32) {
    %c0_i32 = arith.constant 0 : i32
    %c0_i32_0 = arith.constant 0 : i32
    %c0_i32_1 = arith.constant 0 : i32
    return %c0_i32, %c0_i32_0 : i32, i32
  }
  func.func @transform_6(%arg0: i32) -> (i32, i32) {
    %c0_i32 = arith.constant 0 : i32
    %c0_i32_0 = arith.constant 0 : i32
    %c0_i32_1 = arith.constant 0 : i32
    return %c0_i32, %c0_i32_0 : i32, i32
  }
  func.func @transform_7(%arg0: i32) -> (i32, i32) {
    %c0_i32 = arith.constant 0 : i32
    %c0_i32_0 = arith.constant 0 : i32
    %c0_i32_1 = arith.constant 0 : i32
    return %c0_i32, %c0_i32_0 : i32, i32
  }
  func.func @transform_8(%arg0: i32) -> (i32, i32) {
    %c0_i32 = arith.constant 0 : i32
    %c0_i32_0 = arith.constant 0 : i32
    %c0_i32_1 = arith.constant 0 : i32
    return %c0_i32, %c0_i32_0 : i32, i32
  }
  func.func @transform_9(%arg0: i32) -> (i32, i32) {
    %c0_i32 = arith.constant 0 : i32
    %c0_i32_0 = arith.constant 0 : i32
    %c0_i32_1 = arith.constant 0 : i32
    return %c0_i32, %c0_i32_0 : i32, i32
  }
  func.func @transform_10(%arg0: i32) -> (i32, i32) {
    %c0_i32 = arith.constant 0 : i32
    %c0_i32_0 = arith.constant 0 : i32
    %c0_i32_1 = arith.constant 0 : i32
    return %c0_i32, %c0_i32_0 : i32, i32
  }
  func.func @transform_11(%arg0: i32) -> (i32, i32) {
    %c0_i32 = arith.constant 0 : i32
    %c0_i32_0 = arith.constant 0 : i32
    %c0_i32_1 = arith.constant 0 : i32
    return %c0_i32, %c0_i32_0 : i32, i32
  }
  func.func @transform_12(%arg0: i32) -> (i32, i32) {
    %c0_i32 = arith.constant 0 : i32
    %c0_i32_0 = arith.constant 0 : i32
    %c0_i32_1 = arith.constant 0 : i32
    return %c0_i32, %c0_i32_0 : i32, i32
  }
  func.func @transform_13(%arg0: i32) -> (i32, i32) {
    %c0_i32 = arith.constant 0 : i32
    %c0_i32_0 = arith.constant 0 : i32
    %c0_i32_1 = arith.constant 0 : i32
    return %c0_i32, %c0_i32_0 : i32, i32
  }
  func.func @transform_14(%arg0: i32) -> (i32, i32) {
    %c0_i32 = arith.constant 0 : i32
    %c0_i32_0 = arith.constant 0 : i32
    %c0_i32_1 = arith.constant 0 : i32
    return %c0_i32, %c0_i32_0 : i32, i32
  }
  func.func @transform_15(%arg0: i32) -> (i32, i32) {
    %c0_i32 = arith.constant 0 : i32
    %c0_i32_0 = arith.constant 0 : i32
    %c0_i32_1 = arith.constant 0 : i32
    return %c0_i32, %c0_i32_0 : i32, i32
  }
  func.func @transform_16(%arg0: i32) -> (i32, i32) {
    %c0_i32 = arith.constant 0 : i32
    %c0_i32_0 = arith.constant 0 : i32
    %c0_i32_1 = arith.constant 0 : i32
    return %c0_i32, %c0_i32_0 : i32, i32
  }
  func.func @transform_17(%arg0: i32) -> (i32, i32) {
    %c0_i32 = arith.constant 0 : i32
    %c0_i32_0 = arith.constant 0 : i32
    %c0_i32_1 = arith.constant 0 : i32
    return %c0_i32, %c0_i32_0 : i32, i32
  }
  func.func @transform_18(%arg0: i32) -> (i32, i32) {
    %c0_i32 = arith.constant 0 : i32
    %c0_i32_0 = arith.constant 0 : i32
    %c0_i32_1 = arith.constant 0 : i32
    return %c0_i32, %c0_i32_0 : i32, i32
  }
  func.func @transform_19(%arg0: i32) -> (i32, i32, i32) {
    %c0_i32 = arith.constant 0 : i32
    %c0_i32_0 = arith.constant 0 : i32
    %c0_i32_1 = arith.constant 0 : i32
    return %arg0, %c0_i32, %c0_i32_0 : i32, i32, i32
  }
}

</mosaic_0001>

<llo_original>
// kernel: _lambda_.1
$region0: #{_lambda_.1}
  #allocation0 [shape = 'u32[]', space=smem, size = 0x4, offset = 0x4, fixed_abs, tag = 'smem constant byte address 0x4 - core index']
  #allocation1 [shape = 'u32[144,128]{1,0:T(1,128)}', space=vmem, size = 0x12000, scoped, tag = 'internal scratch']
  %s0 = inlined_call_operand.vmem [shape: bf16[2,16,128], index: 0, kind: input, shape index: {}]
  %s1 = inlined_call_operand.hbm [shape: bf16[384,128], index: 1, kind: input, shape index: {}]
  %s2 = inlined_call_operand.hbm [shape: f32[1,128], index: 2, kind: input, shape index: {}]
  %s3 = inlined_call_operand.hbm [shape: f32[1,128], index: 3, kind: input, shape index: {}]
  %s4 = inlined_call_operand.hbm [shape: bf16[384,128], index: 4, kind: input, shape index: {}]
  %s5 = inlined_call_operand.hbm [shape: f32[1,128], index: 5, kind: input, shape index: {}]
  %s6 = inlined_call_operand.hbm [shape: f32[1,128], index: 6, kind: input, shape index: {}]
  %s7 = inlined_call_operand.hbm [shape: bf16[128,128], index: 7, kind: input, shape index: {}]
  %s8 = inlined_call_operand.hbm [shape: f32[1,128], index: 8, kind: input, shape index: {}]
  %s9 = inlined_call_operand.hbm [shape: bf16[384,128], index: 9, kind: input, shape index: {}]
  %s10 = inlined_call_operand.hbm [shape: f32[1,128], index: 10, kind: input, shape index: {}]
  %s11 = inlined_call_operand.vmem [shape: f32[1,128], index: 11, kind: input, shape index: {}]
  %s12 = inlined_call_operand.hbm [shape: bf16[384,128], index: 12, kind: input, shape index: {}]
  %s13 = inlined_call_operand.vmem [shape: f32[1,128], index: 13, kind: input, shape index: {}]
  %s14 = inlined_call_operand.vmem [shape: f32[1,128], index: 14, kind: input, shape index: {}]
  %s15 = inlined_call_operand.hbm [shape: bf16[128,128], index: 15, kind: input, shape index: {}]
  %s16 = inlined_call_operand.vmem [shape: f32[1,128], index: 16, kind: input, shape index: {}]
  %s17 = inlined_call_operand.vmem [shape: f32[128,128], index: 17, kind: input, shape index: {}]
  %s18 = inlined_call_operand.vmem [shape: f32[1,128], index: 18, kind: input, shape index: {}]
  %s19 = inlined_call_operand.hbm [shape: f32[1,2,128], index: 19, kind: output, shape index: {}]
  %s20 = sld [smem:[#allocation0]]
  $region134: #{_lambda_.1} parent=0
    _
  %s22 = ssub.s32 1, %s20
  %s23 = scalar_select 0, %s22, %s20
  $region1: #{_lambda_.1} parent=0
    #allocation2 [shape = 'u8[98304]{0}', space=vmem, size = 0x18000, scoped, tag = 'input window, operand 1, single buffered']
    #allocation3 [shape = 's32[1]{0}', space=sflag, size = 0x4, scoped, tag = 'scoped memory for _lambda_.1']
    #allocation4 [shape = 's32[1]{0}', space=sflag, size = 0x4, scoped, tag = 'scoped memory for _lambda_.1']
    #allocation5 [shape = 'u8[512]{0}', space=vmem, size = 0x400, scoped, tag = 'input window, operand 2, single buffered']
    #allocation6 [shape = 's32[1]{0}', space=sflag, size = 0x4, scoped, tag = 'scoped memory for _lambda_.1']
    #allocation7 [shape = 'u8[512]{0}', space=vmem, size = 0x400, scoped, tag = 'input window, operand 3, single buffered']
    #allocation8 [shape = 'u8[98304]{0}', space=vmem, size = 0x18000, scoped, tag = 'input window, operand 4, single buffered']
    #allocation9 [shape = 's32[1]{0}', space=sflag, size = 0x4, scoped, tag = 'scoped memory for _lambda_.1']
    #allocation10 [shape = 'u8[512]{0}', space=vmem, size = 0x400, scoped, tag = 'input window, operand 5, single buffered']
    #allocation11 [shape = 'u8[512]{0}', space=vmem, size = 0x400, scoped, tag = 'input window, operand 6, single buffered']
    #allocation12 [shape = 's32[1]{0}', space=sflag, size = 0x4, scoped, tag = 'scoped memory for _lambda_.1']
    #allocation13 [shape = 'u8[32768]{0}', space=vmem, size = 0x8000, scoped, tag = 'input window, operand 7, single buffered']
    #allocation14 [shape = 'u8[512]{0}', space=vmem, size = 0x400, scoped, tag = 'input window, operand 8, single buffered']
    #allocation15 [shape = 's32[1]{0}', space=sflag, size = 0x4, scoped, tag = 'scoped memory for _lambda_.1']
    #allocation16 [shape = 'u8[98304]{0}', space=vmem, size = 0x18000, scoped, tag = 'input window, operand 9, single buffered']
    #allocation17 [shape = 'u8[512]{0}', space=vmem, size = 0x400, scoped, tag = 'input window, operand 10, single buffered']
    #allocation18 [shape = 's32[1]{0}', space=sflag, size = 0x4, scoped, tag = 'scoped memory for _lambda_.1']
    #allocation19 [shape = 'u8[98304]{0}', space=vmem, size = 0x18000, scoped, tag = 'input window, operand 12, single buffered']
    #allocation20 [shape = 'u8[32768]{0}', space=vmem, size = 0x8000, scoped, tag = 'input window, operand 15, single buffered']
    #allocation21 [shape = 's32[1]{0}', space=sflag, size = 0x4, scoped, tag = 'scoped memory for _lambda_.1']
    #allocation22 [shape = 'u8[1024]{0}', space=vmem, size = 0x400, scoped, tag = 'output window, operand 0, single buffered']
    %24 = vsyncpa [#allocation3], 0
    %25 = vsyncpa [#allocation6], 0
    %26 = vsyncpa [#allocation9], 0
    %27 = vsyncpa [#allocation12], 0
    %28 = vsyncpa [#allocation15], 0
    %29 = vsyncpa [#allocation18], 0
    %30 = vsyncpa [#allocation21], 0
    %31 = vsyncpa [#allocation4], 0
    // Predicated region
    $region2: #{_lambda_.1} parent=1 // pred_check
      _
    $region3: #{_lambda_.1} parent=1 // pred_check_branch
      %33 = sbr.rel (0) target = $region5
    $region4: #{_lambda_.1} parent=1 // pred_region
      _
    $region5: #{_lambda_.1} parent=1 // pred_fallthru
      _
    // Predicated region
    $region6: #{_lambda_.1} parent=1 // pred_check
      _
    $region7: #{_lambda_.1} parent=1 // pred_check_branch
      %35 = sbr.rel (0) target = $region9
    $region8: #{_lambda_.1} parent=1 // pred_region
      %s37 = ssub.s32 3072, 3072
      %38 = vsyncadd [#allocation3], %s37
      %s39 = sshll.u32 [#allocation2], 4
      %s40 = int_to_ptr.vmem [resolvable:$true] %s39
      %45 = dma.hbm_to_vmem [thread:$0]  %s1, 3072, %s40, [#allocation3], 64, 64, 4
    $region9: #{_lambda_.1} parent=1 // pred_fallthru
      _
    // Predicated region
    $region10: #{_lambda_.1} parent=1 // pred_check
      _
    $region11: #{_lambda_.1} parent=1 // pred_check_branch
      %47 = sbr.rel (0) target = $region13
    $region12: #{_lambda_.1} parent=1 // pred_region
      %s49 = ssub.s32 16, 16
      %50 = vsyncadd [#allocation6], %s49
      %s52 = sshll.u32 [#allocation5], 4
      %s53 = int_to_ptr.vmem [resolvable:$true] %s52
      %55 = dma.hbm_to_vmem [thread:$0]  %s2, 16, %s53, [#allocation6]
    $region13: #{_lambda_.1} parent=1 // pred_fallthru
      _
    // Predicated region
    $region14: #{_lambda_.1} parent=1 // pred_check
      _
    $region15: #{_lambda_.1} parent=1 // pred_check_branch
      %57 = sbr.rel (0) target = $region17
    $region16: #{_lambda_.1} parent=1 // pred_region
      %s59 = ssub.s32 16, 16
      %60 = vsyncadd [#allocation6], %s59
      %s62 = sshll.u32 [#allocation7], 4
      %s63 = int_to_ptr.vmem [resolvable:$true] %s62
      %65 = dma.hbm_to_vmem [thread:$0]  %s3, 16, %s63, [#allocation6]
    $region17: #{_lambda_.1} parent=1 // pred_fallthru
      _
    // Predicated region
    $region18: #{_lambda_.1} parent=1 // pred_check
      _
    $region19: #{_lambda_.1} parent=1 // pred_check_branch
      %67 = sbr.rel (0) target = $region21
    $region20: #{_lambda_.1} parent=1 // pred_region
      %s69 = ssub.s32 3072, 3072
      %70 = vsyncadd [#allocation9], %s69
      %s71 = sshll.u32 [#allocation8], 4
      %s72 = int_to_ptr.vmem [resolvable:$true] %s71
      %77 = dma.hbm_to_vmem [thread:$0]  %s4, 3072, %s72, [#allocation9], 64, 64, 4
    $region21: #{_lambda_.1} parent=1 // pred_fallthru
      _
    // Predicated region
    $region22: #{_lambda_.1} parent=1 // pred_check
      _
    $region23: #{_lambda_.1} parent=1 // pred_check_branch
      %79 = sbr.rel (0) target = $region25
    $region24: #{_lambda_.1} parent=1 // pred_region
      %s81 = ssub.s32 16, 16
      %82 = vsyncadd [#allocation9], %s81
      %s84 = sshll.u32 [#allocation10], 4
      %s85 = int_to_ptr.vmem [resolvable:$true] %s84
      %87 = dma.hbm_to_vmem [thread:$0]  %s5, 16, %s85, [#allocation9]
    $region25: #{_lambda_.1} parent=1 // pred_fallthru
      _
    // Predicated region
    $region26: #{_lambda_.1} parent=1 // pred_check
      _
    $region27: #{_lambda_.1} parent=1 // pred_check_branch
      %89 = sbr.rel (0) target = $region29
    $region28: #{_lambda_.1} parent=1 // pred_region
      %s91 = ssub.s32 16, 16
      %92 = vsyncadd [#allocation12], %s91
      %s94 = sshll.u32 [#allocation11], 4
      %s95 = int_to_ptr.vmem [resolvable:$true] %s94
      %97 = dma.hbm_to_vmem [thread:$0]  %s6, 16, %s95, [#allocation12]
    $region29: #{_lambda_.1} parent=1 // pred_fallthru
      _
    // Predicated region
    $region30: #{_lambda_.1} parent=1 // pred_check
      _
    $region31: #{_lambda_.1} parent=1 // pred_check_branch
      %99 = sbr.rel (0) target = $region33
    $region32: #{_lambda_.1} parent=1 // pred_region
      %s101 = ssub.s32 1024, 1024
      %102 = vsyncadd [#allocation12], %s101
      %s103 = sshll.u32 [#allocation13], 4
      %s104 = int_to_ptr.vmem [resolvable:$true] %s103
      %109 = dma.hbm_to_vmem [thread:$0]  %s7, 1024, %s104, [#allocation12], 64, 64, 4
    $region33: #{_lambda_.1} parent=1 // pred_fallthru
      _
    // Predicated region
    $region34: #{_lambda_.1} parent=1 // pred_check
      _
    $region35: #{_lambda_.1} parent=1 // pred_check_branch
      %111 = sbr.rel (0) target = $region37
    $region36: #{_lambda_.1} parent=1 // pred_region
      %s113 = ssub.s32 16, 16
      %114 = vsyncadd [#allocation15], %s113
      %s116 = sshll.u32 [#allocation14], 4
      %s117 = int_to_ptr.vmem [resolvable:$true] %s116
      %119 = dma.hbm_to_vmem [thread:$0]  %s8, 16, %s117, [#allocation15]
    $region37: #{_lambda_.1} parent=1 // pred_fallthru
      _
    // Predicated region
    $region38: #{_lambda_.1} parent=1 // pred_check
      _
    $region39: #{_lambda_.1} parent=1 // pred_check_branch
      %121 = sbr.rel (0) target = $region41
    $region40: #{_lambda_.1} parent=1 // pred_region
      %s123 = ssub.s32 3072, 3072
      %124 = vsyncadd [#allocation15], %s123
      %s125 = sshll.u32 [#allocation16], 4
      %s126 = int_to_ptr.vmem [resolvable:$true] %s125
      %131 = dma.hbm_to_vmem [thread:$0]  %s9, 3072, %s126, [#allocation15], 64, 64, 4
    $region41: #{_lambda_.1} parent=1 // pred_fallthru
      _
    // Predicated region
    $region42: #{_lambda_.1} parent=1 // pred_check
      _
    $region43: #{_lambda_.1} parent=1 // pred_check_branch
      %133 = sbr.rel (0) target = $region45
    $region44: #{_lambda_.1} parent=1 // pred_region
      %s135 = ssub.s32 16, 16
      %136 = vsyncadd [#allocation18], %s135
      %s138 = sshll.u32 [#allocation17], 4
      %s139 = int_to_ptr.vmem [resolvable:$true] %s138
      %141 = dma.hbm_to_vmem [thread:$0]  %s10, 16, %s139, [#allocation18]
    $region45: #{_lambda_.1} parent=1 // pred_fallthru
      _
    // Predicated region
    $region46: #{_lambda_.1} parent=1 // pred_check
      _
    $region47: #{_lambda_.1} parent=1 // pred_check_branch
      %143 = sbr.rel (0) target = $region49
    $region48: #{_lambda_.1} parent=1 // pred_region
      _
    $region49: #{_lambda_.1} parent=1 // pred_fallthru
      _
    // Predicated region
    $region50: #{_lambda_.1} parent=1 // pred_check
      _
    $region51: #{_lambda_.1} parent=1 // pred_check_branch
      %145 = sbr.rel (0) target = $region53
    $region52: #{_lambda_.1} parent=1 // pred_region
      %s147 = ssub.s32 3072, 3072
      %148 = vsyncadd [#allocation18], %s147
      %s149 = sshll.u32 [#allocation19], 4
      %s150 = int_to_ptr.vmem [resolvable:$true] %s149
      %155 = dma.hbm_to_vmem [thread:$0]  %s12, 3072, %s150, [#allocation18], 64, 64, 4
    $region53: #{_lambda_.1} parent=1 // pred_fallthru
      _
    // Predicated region
    $region54: #{_lambda_.1} parent=1 // pred_check
      _
    $region55: #{_lambda_.1} parent=1 // pred_check_branch
      %157 = sbr.rel (0) target = $region57
    $region56: #{_lambda_.1} parent=1 // pred_region
      _
    $region57: #{_lambda_.1} parent=1 // pred_fallthru
      _
    // Predicated region
    $region58: #{_lambda_.1} parent=1 // pred_check
      _
    $region59: #{_lambda_.1} parent=1 // pred_check_branch
      %159 = sbr.rel (0) target = $region61
    $region60: #{_lambda_.1} parent=1 // pred_region
      _
    $region61: #{_lambda_.1} parent=1 // pred_fallthru
      _
    // Predicated region
    $region62: #{_lambda_.1} parent=1 // pred_check
      _
    $region63: #{_lambda_.1} parent=1 // pred_check_branch
      %161 = sbr.rel (0) target = $region65
    $region64: #{_lambda_.1} parent=1 // pred_region
      %s163 = ssub.s32 1024, 1024
      %164 = vsyncadd [#allocation21], %s163
      %s165 = sshll.u32 [#allocation20], 4
      %s166 = int_to_ptr.vmem [resolvable:$true] %s165
      %171 = dma.hbm_to_vmem [thread:$0]  %s15, 1024, %s166, [#allocation21], 64, 64, 4
    $region65: #{_lambda_.1} parent=1 // pred_fallthru
      _
    // Predicated region
    $region66: #{_lambda_.1} parent=1 // pred_check
      _
    $region67: #{_lambda_.1} parent=1 // pred_check_branch
      %173 = sbr.rel (0) target = $region69
    $region68: #{_lambda_.1} parent=1 // pred_region
      _
    $region69: #{_lambda_.1} parent=1 // pred_fallthru
      _
    // Predicated region
    $region70: #{_lambda_.1} parent=1 // pred_check
      _
    $region71: #{_lambda_.1} parent=1 // pred_check_branch
      %175 = sbr.rel (0) target = $region73
    $region72: #{_lambda_.1} parent=1 // pred_region
      _
    $region73: #{_lambda_.1} parent=1 // pred_fallthru
      _
    // Predicated region
    $region74: #{_lambda_.1} parent=1 // pred_check
      _
    $region75: #{_lambda_.1} parent=1 // pred_check_branch
      %177 = sbr.rel (0) target = $region77
    $region76: #{_lambda_.1} parent=1 // pred_region
      _
    $region77: #{_lambda_.1} parent=1 // pred_fallthru
      _
    // Predicated region
    $region78: #{_lambda_.1} parent=1 // pred_check
      _
    $region79: #{_lambda_.1} parent=1 // pred_check_branch
      %179 = sbr.rel (0) target = $region81
    $region80: #{_lambda_.1} parent=1 // pred_region
      %180 = dma.done [#allocation3], 3072
    $region81: #{_lambda_.1} parent=1 // pred_fallthru
      _
    // Predicated region
    $region82: #{_lambda_.1} parent=1 // pred_check
      _
    $region83: #{_lambda_.1} parent=1 // pred_check_branch
      %182 = sbr.rel (0) target = $region85
    $region84: #{_lambda_.1} parent=1 // pred_region
      %183 = dma.done [#allocation6], 16
    $region85: #{_lambda_.1} parent=1 // pred_fallthru
      _
    // Predicated region
    $region86: #{_lambda_.1} parent=1 // pred_check
      _
    $region87: #{_lambda_.1} parent=1 // pred_check_branch
      %185 = sbr.rel (0) target = $region89
    $region88: #{_lambda_.1} parent=1 // pred_region
      %186 = dma.done [#allocation6], 16
    $region89: #{_lambda_.1} parent=1 // pred_fallthru
      _
    // Predicated region
    $region90: #{_lambda_.1} parent=1 // pred_check
      _
    $region91: #{_lambda_.1} parent=1 // pred_check_branch
      %188 = sbr.rel (0) target = $region93
    $region92: #{_lambda_.1} parent=1 // pred_region
      %189 = dma.done [#allocation9], 3072
    $region93: #{_lambda_.1} parent=1 // pred_fallthru
      _
    // Predicated region
    $region94: #{_lambda_.1} parent=1 // pred_check
      _
    $region95: #{_lambda_.1} parent=1 // pred_check_branch
      %191 = sbr.rel (0) target = $region97
    $region96: #{_lambda_.1} parent=1 // pred_region
      %192 = dma.done [#allocation9], 16
    $region97: #{_lambda_.1} parent=1 // pred_fallthru
      _
    // Predicated region
    $region98: #{_lambda_.1} parent=1 // pred_check
      _
    $region99: #{_lambda_.1} parent=1 // pred_check_branch
      %194 = sbr.rel (0) target = $region101
    $region100: #{_lambda_.1} parent=1 // pred_region
      %195 = dma.done [#allocation12], 16
    $region101: #{_lambda_.1} parent=1 // pred_fallthru
      _
    // Predicated region
    $region102: #{_lambda_.1} parent=1 // pred_check
      _
    $region103: #{_lambda_.1} parent=1 // pred_check_branch
      %197 = sbr.rel (0) target = $region105
    $region104: #{_lambda_.1} parent=1 // pred_region
      %198 = dma.done [#allocation12], 1024
    $region105: #{_lambda_.1} parent=1 // pred_fallthru
      _
    // Predicated region
    $region106: #{_lambda_.1} parent=1 // pred_check
      _
    $region107: #{_lambda_.1} parent=1 // pred_check_branch
      %200 = sbr.rel (0) target = $region109
    $region108: #{_lambda_.1} parent=1 // pred_region
      %201 = dma.done [#allocation15], 16
    $region109: #{_lambda_.1} parent=1 // pred_fallthru
      _
    // Predicated region
    $region110: #{_lambda_.1} parent=1 // pred_check
      _
    $region111: #{_lambda_.1} parent=1 // pred_check_branch
      %203 = sbr.rel (0) target = $region113
    $region112: #{_lambda_.1} parent=1 // pred_region
      %204 = dma.done [#allocation15], 3072
    $region113: #{_lambda_.1} parent=1 // pred_fallthru
      _
    // Predicated region
    $region114: #{_lambda_.1} parent=1 // pred_check
      _
    $region115: #{_lambda_.1} parent=1 // pred_check_branch
      %206 = sbr.rel (0) target = $region117
    $region116: #{_lambda_.1} parent=1 // pred_region
      %207 = dma.done [#allocation18], 16
    $region117: #{_lambda_.1} parent=1 // pred_fallthru
      _
    // Predicated region
    $region118: #{_lambda_.1} parent=1 // pred_check
      _
    $region119: #{_lambda_.1} parent=1 // pred_check_branch
      %209 = sbr.rel (0) target = $region121
    $region120: #{_lambda_.1} parent=1 // pred_region
      %210 = dma.done [#allocation18], 3072
    $region121: #{_lambda_.1} parent=1 // pred_fallthru
      _
    // Predicated region
    $region122: #{_lambda_.1} parent=1 // pred_check
      _
    $region123: #{_lambda_.1} parent=1 // pred_check_branch
      %212 = sbr.rel (0) target = $region125
    $region124: #{_lambda_.1} parent=1 // pred_region
      %213 = dma.done [#allocation21], 1024
    $region125: #{_lambda_.1} parent=1 // pred_fallthru
      _
    %v215 = vld [vmem:[%s0] sm:$0xf]
    %v216 = vld [vmem:[%s0 + $0x4] sm:$0xf]
    %v217 = vld [vmem:[%s0 + $0x8] sm:$0xf]
    %v218 = vld [vmem:[%s0 + $0xc] sm:$0xf]
    %v223 = vunpack.c.l.b16 %v215
    %v224 = vunpack.c.l.b16 %v216
    %v225 = vunpack.c.l.b16 %v217
    %v226 = vunpack.c.l.b16 %v218
    %v227 = vpack.c.b16 %v224, %v223
    %v228 = vpack.c.b16 %v226, %v225
    %v229 = vrot.slane %v227, 7
    %v230 = vrot.slane %v228, 7
    %vm231 = vcmask 1040384
    %v234 = vsel %vm231, 0, %v229
    %v237 = vsel %vm231, 0, %v230
    %v239 = vld [vmem:[#allocation2] sm:$0xf]
    %v240 = vld [vmem:[#allocation2 + $0x4] sm:$0xf]
    %v241 = vld [vmem:[#allocation2 + $0x8] sm:$0xf]
    %v242 = vld [vmem:[#allocation2 + $0xc] sm:$0xf]
    %v243 = vld [vmem:[#allocation2 + $0x10] sm:$0xf]
    %v244 = vld [vmem:[#allocation2 + $0x14] sm:$0xf]
    %v245 = vld [vmem:[#allocation2 + $0x18] sm:$0xf]
    %v246 = vld [vmem:[#allocation2 + $0x1c] sm:$0xf]
    %v247 = vld [vmem:[#allocation2 + $0x20] sm:$0xf]
    %v248 = vld [vmem:[#allocation2 + $0x24] sm:$0xf]
    %v249 = vld [vmem:[#allocation2 + $0x28] sm:$0xf]
    %v250 = vld [vmem:[#allocation2 + $0x2c] sm:$0xf]
    %v251 = vld [vmem:[#allocation2 + $0x30] sm:$0xf]
    %v252 = vld [vmem:[#allocation2 + $0x34] sm:$0xf]
    %v253 = vld [vmem:[#allocation2 + $0x38] sm:$0xf]
    %v254 = vld [vmem:[#allocation2 + $0x3c] sm:$0xf]
    %v256 = vshrl.u32 %v227, 16
    %v258 = vrot.slane %v256, 7
    %v259 = vshll.u32 %v227, 16
    %v261 = vor.u32 %v258, %v259
    %v263 = vshrl.u32 %v228, 16
    %v265 = vrot.slane %v263, 7
    %v266 = vshll.u32 %v228, 16
    %v268 = vor.u32 %v265, %v266
    %vm271 = vcmask 1040384
    %vm272 = vsmask.f32 256
    %vm273 = vmand %vm271, %vm272
    %v274 = vsel %vm273, 0, %v261
    %v275 = vsel %vm273, 0, %v268
    %v276 = vld [vmem:[#allocation2 + $0x40] sm:$0xf]
    %v277 = vld [vmem:[#allocation2 + $0x44] sm:$0xf]
    %v278 = vld [vmem:[#allocation2 + $0x48] sm:$0xf]
    %v279 = vld [vmem:[#allocation2 + $0x4c] sm:$0xf]
    %v280 = vld [vmem:[#allocation2 + $0x50] sm:$0xf]
    %v281 = vld [vmem:[#allocation2 + $0x54] sm:$0xf]
    %v282 = vld [vmem:[#allocation2 + $0x58] sm:$0xf]
    %v283 = vld [vmem:[#allocation2 + $0x5c] sm:$0xf]
    %v284 = vld [vmem:[#allocation2 + $0x60] sm:$0xf]
    %v285 = vld [vmem:[#allocation2 + $0x64] sm:$0xf]
    %v286 = vld [vmem:[#allocation2 + $0x68] sm:$0xf]
    %v287 = vld [vmem:[#allocation2 + $0x6c] sm:$0xf]
    %v288 = vld [vmem:[#allocation2 + $0x70] sm:$0xf]
    %v289 = vld [vmem:[#allocation2 + $0x74] sm:$0xf]
    %v290 = vld [vmem:[#allocation2 + $0x78] sm:$0xf]
    %v291 = vld [vmem:[#allocation2 + $0x7c] sm:$0xf]
    %v308 = vunpack.c.l.b16 %v276
    %v309 = vunpack.c.l.b16 %v277
    %v310 = vunpack.c.l.b16 %v278
    %v311 = vunpack.c.l.b16 %v279
    %v312 = vunpack.c.l.b16 %v280
    %v313 = vunpack.c.l.b16 %v281
    %v314 = vunpack.c.l.b16 %v282
    %v315 = vunpack.c.l.b16 %v283
    %v316 = vunpack.c.l.b16 %v284
    %v317 = vunpack.c.l.b16 %v285
    %v318 = vunpack.c.l.b16 %v286
    %v319 = vunpack.c.l.b16 %v287
    %v320 = vunpack.c.l.b16 %v288
    %v321 = vunpack.c.l.b16 %v289
    %v322 = vunpack.c.l.b16 %v290
    %v323 = vunpack.c.l.b16 %v291
    %v324 = vpack.c.b16 %v309, %v308
    %v325 = vpack.c.b16 %v311, %v310
    %v326 = vpack.c.b16 %v313, %v312
    %v327 = vpack.c.b16 %v315, %v314
    %v328 = vpack.c.b16 %v317, %v316
    %v329 = vpack.c.b16 %v319, %v318
    %v330 = vpack.c.b16 %v321, %v320
    %v331 = vpack.c.b16 %v323, %v322
    %340 = vmatprep.subr.bf16.mxu0 0
    %341 = vmatpush1.bf16.msra.mxu0 %v324
    %342 = vmatprep.subr.bf16.mxu0 0
    %343 = vmatpush1.bf16.msra.mxu0 %v325
    %344 = vmatprep.subr.bf16.mxu0 0
    %345 = vmatpush1.bf16.msra.mxu0 %v326
    %346 = vmatprep.subr.bf16.mxu0 0
    %347 = vmatpush1.bf16.msra.mxu0 %v327
    %348 = vmatprep.subr.bf16.mxu0 0
    %349 = vmatpush1.bf16.msra.mxu0 %v328
    %350 = vmatprep.subr.bf16.mxu0 0
    %351 = vmatpush1.bf16.msra.mxu0 %v329
    %352 = vmatprep.subr.bf16.mxu0 0
    %353 = vmatpush1.bf16.msra.mxu0 %v330
    %354 = vmatprep.subr.bf16.mxu0 0
    %355 = vmatpush1.bf16.msra.mxu0 %v331
    %356 = vmatprep.subr.bf16.mxu0 0
    %357 = vmatpush1.bf16.msra.mxu0 0
    %358 = vmatprep.subr.bf16.mxu0 0
    %359 = vmatpush1.bf16.msra.mxu0 0
    %360 = vmatprep.subr.bf16.mxu0 0
    %361 = vmatpush1.bf16.msra.mxu0 0
    %362 = vmatprep.subr.bf16.mxu0 0
    %363 = vmatpush1.bf16.msra.mxu0 0
    %364 = vmatprep.subr.bf16.mxu0 0
    %365 = vmatpush1.bf16.msra.mxu0 0
    %366 = vmatprep.subr.bf16.mxu0 0
    %367 = vmatpush1.bf16.msra.mxu0 0
    %368 = vmatprep.subr.bf16.mxu0 0
    %369 = vmatpush1.bf16.msra.mxu0 0
    %370 = vmatprep.subr.bf16.mxu0 0
    %371 = vmatpush1.bf16.msra.mxu0 0
    %372 = vmatprep.mubr.bf16.mxu0 0
    %373 = vmatmul.mubr.bf16.gmra.mrb[0].mxu0 %v274
    %v374 = vpop.f32.mrb[0].mxu0
    %v375 = vadd.f32 0.0, %v374
    %v376 = vpop.f32.mrb[0].mxu0
    %v377 = vpop.f32.mrb[0].mxu0
    %v378 = vadd.f32 0.0, %v377
    %v379 = vpop.f32.mrb[0].mxu0
    %380 = vmatprep.mubr.bf16.mxu0 0
    %381 = vmatmul.mubr.bf16.gmra.mrb[0].mxu0 %v275
    %v382 = vpop.f32.mrb[0].mxu0
    %v383 = vadd.f32 0.0, %v382
    %v384 = vpop.f32.mrb[0].mxu0
    %v385 = vpop.f32.mrb[0].mxu0
    %v386 = vadd.f32 0.0, %v385
    %v387 = vpop.f32.mrb[0].mxu0
    %388 = vdwg.mxu0
    %v405 = vunpack.c.l.b16 %v239
    %v406 = vunpack.c.l.b16 %v240
    %v407 = vunpack.c.l.b16 %v241
    %v408 = vunpack.c.l.b16 %v242
    %v409 = vunpack.c.l.b16 %v243
    %v410 = vunpack.c.l.b16 %v244
    %v411 = vunpack.c.l.b16 %v245
    %v412 = vunpack.c.l.b16 %v246
    %v413 = vunpack.c.l.b16 %v247
    %v414 = vunpack.c.l.b16 %v248
    %v415 = vunpack.c.l.b16 %v249
    %v416 = vunpack.c.l.b16 %v250
    %v417 = vunpack.c.l.b16 %v251
    %v418 = vunpack.c.l.b16 %v252
    %v419 = vunpack.c.l.b16 %v253
    %v420 = vunpack.c.l.b16 %v254
    %v421 = vpack.c.b16 %v406, %v405
    %v422 = vpack.c.b16 %v408, %v407
    %v423 = vpack.c.b16 %v410, %v409
    %v424 = vpack.c.b16 %v412, %v411
    %v425 = vpack.c.b16 %v414, %v413
    %v426 = vpack.c.b16 %v416, %v415
    %v427 = vpack.c.b16 %v418, %v417
    %v428 = vpack.c.b16 %v420, %v419
    %437 = vmatprep.subr.bf16.mxu0 0
    %438 = vmatpush1.bf16.msra.mxu0 %v421
    %439 = vmatprep.subr.bf16.mxu0 0
    %440 = vmatpush1.bf16.msra.mxu0 %v422
    %441 = vmatprep.subr.bf16.mxu0 0
    %442 = vmatpush1.bf16.msra.mxu0 %v423
    %443 = vmatprep.subr.bf16.mxu0 0
    %444 = vmatpush1.bf16.msra.mxu0 %v424
    %445 = vmatprep.subr.bf16.mxu0 0
    %446 = vmatpush1.bf16.msra.mxu0 %v425
    %447 = vmatprep.subr.bf16.mxu0 0
    %448 = vmatpush1.bf16.msra.mxu0 %v426
    %449 = vmatprep.subr.bf16.mxu0 0
    %450 = vmatpush1.bf16.msra.mxu0 %v427
    %451 = vmatprep.subr.bf16.mxu0 0
    %452 = vmatpush1.bf16.msra.mxu0 %v428
    %453 = vmatprep.subr.bf16.mxu0 0
    %454 = vmatpush1.bf16.msra.mxu0 0
    %455 = vmatprep.subr.bf16.mxu0 0
    %456 = vmatpush1.bf16.msra.mxu0 0
    %457 = vmatprep.subr.bf16.mxu0 0
    %458 = vmatpush1.bf16.msra.mxu0 0
    %459 = vmatprep.subr.bf16.mxu0 0
    %460 = vmatpush1.bf16.msra.mxu0 0
    %461 = vmatprep.subr.bf16.mxu0 0
    %462 = vmatpush1.bf16.msra.mxu0 0
    %463 = vmatprep.subr.bf16.mxu0 0
    %464 = vmatpush1.bf16.msra.mxu0 0
    %465 = vmatprep.subr.bf16.mxu0 0
    %466 = vmatpush1.bf16.msra.mxu0 0
    %467 = vmatprep.subr.bf16.mxu0 0
    %468 = vmatpush1.bf16.msra.mxu0 0
    %469 = vmatprep.mubr.bf16.mxu0 0
    %470 = vmatmul.mubr.bf16.gmra.mrb[0].mxu0 %v234
    %v471 = vpop.f32.mrb[0].mxu0
    %v472 = vadd.f32 %v375, %v471
    %v473 = vpop.f32.mrb[0].mxu0
    %v474 = vpop.f32.mrb[0].mxu0
    %v475 = vadd.f32 %v378, %v474
    %v476 = vpop.f32.mrb[0].mxu0
    %477 = vmatprep.mubr.bf16.mxu0 0
    %478 = vmatmul.mubr.bf16.gmra.mrb[0].mxu0 %v237
    %v479 = vpop.f32.mrb[0].mxu0
    %v480 = vadd.f32 %v383, %v479
    %v481 = vpop.f32.mrb[0].mxu0
    %v482 = vpop.f32.mrb[0].mxu0
    %v483 = vadd.f32 %v386, %v482
    %v484 = vpop.f32.mrb[0].mxu0
    %485 = vdwg.mxu0
    %v486 = vld [vmem:[#allocation2 + $0x80] sm:$0xf]
    %v487 = vld [vmem:[#allocation2 + $0x84] sm:$0xf]
    %v488 = vld [vmem:[#allocation2 + $0x88] sm:$0xf]
    %v489 = vld [vmem:[#allocation2 + $0x8c] sm:$0xf]
    %v490 = vld [vmem:[#allocation2 + $0x90] sm:$0xf]
    %v491 = vld [vmem:[#allocation2 + $0x94] sm:$0xf]
    %v492 = vld [vmem:[#allocation2 + $0x98] sm:$0xf]
    %v493 = vld [vmem:[#allocation2 + $0x9c] sm:$0xf]
    %v494 = vld [vmem:[#allocation2 + $0xa0] sm:$0xf]
    %v495 = vld [vmem:[#allocation2 + $0xa4] sm:$0xf]
    %v496 = vld [vmem:[#allocation2 + $0xa8] sm:$0xf]
    %v497 = vld [vmem:[#allocation2 + $0xac] sm:$0xf]
    %v498 = vld [vmem:[#allocation2 + $0xb0] sm:$0xf]
    %v499 = vld [vmem:[#allocation2 + $0xb4] sm:$0xf]
    %v500 = vld [vmem:[#allocation2 + $0xb8] sm:$0xf]
    %v501 = vld [vmem:[#allocation2 + $0xbc] sm:$0xf]
    %v520 = vunpack.c.l.b16 %v486
    %v521 = vunpack.c.l.b16 %v487
    %v522 = vunpack.c.l.b16 %v488
    %v523 = vunpack.c.l.b16 %v489
    %v524 = vunpack.c.l.b16 %v490
    %v525 = vunpack.c.l.b16 %v491
    %v526 = vunpack.c.l.b16 %v492
    %v527 = vunpack.c.l.b16 %v493
    %v528 = vunpack.c.l.b16 %v494
    %v529 = vunpack.c.l.b16 %v495
    %v530 = vunpack.c.l.b16 %v496
    %v531 = vunpack.c.l.b16 %v497
    %v532 = vunpack.c.l.b16 %v498
    %v533 = vunpack.c.l.b16 %v499
    %v534 = vunpack.c.l.b16 %v500
    %v535 = vunpack.c.l.b16 %v501
    %v536 = vpack.c.b16 %v521, %v520
    %v537 = vpack.c.b16 %v523, %v522
    %v538 = vpack.c.b16 %v525, %v524
    %v539 = vpack.c.b16 %v527, %v526
    %v540 = vpack.c.b16 %v529, %v528
    %v541 = vpack.c.b16 %v531, %v530
    %v542 = vpack.c.b16 %v533, %v532
    %v543 = vpack.c.b16 %v535, %v534
    %552 = vmatprep.subr.bf16.mxu0 0
    %553 = vmatpush1.bf16.msra.mxu0 %v536
    %554 = vmatprep.subr.bf16.mxu0 0
    %555 = vmatpush1.bf16.msra.mxu0 %v537
    %556 = vmatprep.subr.bf16.mxu0 0
    %557 = vmatpush1.bf16.msra.mxu0 %v538
    %558 = vmatprep.subr.bf16.mxu0 0
    %559 = vmatpush1.bf16.msra.mxu0 %v539
    %560 = vmatprep.subr.bf16.mxu0 0
    %561 = vmatpush1.bf16.msra.mxu0 %v540
    %562 = vmatprep.subr.bf16.mxu0 0
    %563 = vmatpush1.bf16.msra.mxu0 %v541
    %564 = vmatprep.subr.bf16.mxu0 0
    %565 = vmatpush1.bf16.msra.mxu0 %v542
    %566 = vmatprep.subr.bf16.mxu0 0
    %567 = vmatpush1.bf16.msra.mxu0 %v543
    %568 = vmatprep.subr.bf16.mxu0 0
    %569 = vmatpush1.bf16.msra.mxu0 0
    %570 = vmatprep.subr.bf16.mxu0 0
    %571 = vmatpush1.bf16.msra.mxu0 0
    %572 = vmatprep.subr.bf16.mxu0 0
    %573 = vmatpush1.bf16.msra.mxu0 0
    %574 = vmatprep.subr.bf16.mxu0 0
    %575 = vmatpush1.bf16.msra.mxu0 0
    %576 = vmatprep.subr.bf16.mxu0 0
    %577 = vmatpush1.bf16.msra.mxu0 0
    %578 = vmatprep.subr.bf16.mxu0 0
    %579 = vmatpush1.bf16.msra.mxu0 0
    %580 = vmatprep.subr.bf16.mxu0 0
    %581 = vmatpush1.bf16.msra.mxu0 0
    %582 = vmatprep.subr.bf16.mxu0 0
    %583 = vmatpush1.bf16.msra.mxu0 0
    %584 = vmatprep.mubr.bf16.mxu0 0
    %585 = vmatmul.mubr.bf16.gmra.mrb[0].mxu0 %v227
    %v586 = vpop.f32.mrb[0].mxu0
    %v587 = vadd.f32 0.0, %v586
    %v588 = vpop.f32.mrb[0].mxu0
    %v589 = vpop.f32.mrb[0].mxu0
    %v590 = vadd.f32 0.0, %v589
    %v591 = vpop.f32.mrb[0].mxu0
    %592 = vmatprep.mubr.bf16.mxu0 0
    %593 = vmatmul.mubr.bf16.gmra.mrb[0].mxu0 %v228
    %v594 = vpop.f32.mrb[0].mxu0
    %v595 = vadd.f32 0.0, %v594
    %v596 = vpop.f32.mrb[0].mxu0
    %v597 = vpop.f32.mrb[0].mxu0
    %v598 = vadd.f32 0.0, %v597
    %v599 = vpop.f32.mrb[0].mxu0
    %600 = vdwg.mxu0
    %v601 = vadd.f32 %v472, %v587
    %v602 = vadd.f32 %v475, %v590
    %v603 = vadd.f32 %v480, %v595
    %v604 = vadd.f32 %v483, %v598
    %v605 = vld [vmem:[#allocation5] sm:$0x1]
    %v607 = vlaneseq
    %v608 = vshrl.u32 %v607, 7
    %v609 = vsub.s32 0, %v608
    %v610 = vrot.slane %v605, %v609
    %v612 = vmul.f32 %v601, %v610
    %v613 = vmul.f32 %v602, %v610
    %v614 = vmul.f32 %v603, %v610
    %v615 = vmul.f32 %v604, %v610
    %v616 = vld [vmem:[#allocation7] sm:$0x1]
    %v618 = vlaneseq
    %v619 = vshrl.u32 %v618, 7
    %v620 = vsub.s32 0, %v619
    %v621 = vrot.slane %v616, %v620
    %v623 = vadd.f32 %v612, %v621
    %v624 = vadd.f32 %v613, %v621
    %v625 = vadd.f32 %v614, %v621
    %v626 = vadd.f32 %v615, %v621
    %v627 = vmax.f32 %v623, 0.0
    %v628 = vmax.f32 %v624, 0.0
    %v629 = vmax.f32 %v625, 0.0
    %v630 = vmax.f32 %v626, 0.0
    %v631 = vpack.c.bf16 %v628, %v627
    %v632 = vpack.c.bf16 %v630, %v629
    %v635 = vrot.slane %v631, 7
    %v636 = vrot.slane %v632, 7
    %v638 = vsel %vm231, 0, %v635
    %v641 = vsel %vm231, 0, %v636
    %v643 = vld [vmem:[#allocation8] sm:$0xf]
    %v644 = vld [vmem:[#allocation8 + $0x4] sm:$0xf]
    %v645 = vld [vmem:[#allocation8 + $0x8] sm:$0xf]
    %v646 = vld [vmem:[#allocation8 + $0xc] sm:$0xf]
    %v647 = vld [vmem:[#allocation8 + $0x10] sm:$0xf]
    %v648 = vld [vmem:[#allocation8 + $0x14] sm:$0xf]
    %v649 = vld [vmem:[#allocation8 + $0x18] sm:$0xf]
    %v650 = vld [vmem:[#allocation8 + $0x1c] sm:$0xf]
    %v651 = vld [vmem:[#allocation8 + $0x20] sm:$0xf]
    %v652 = vld [vmem:[#allocation8 + $0x24] sm:$0xf]
    %v653 = vld [vmem:[#allocation8 + $0x28] sm:$0xf]
    %v654 = vld [vmem:[#allocation8 + $0x2c] sm:$0xf]
    %v655 = vld [vmem:[#allocation8 + $0x30] sm:$0xf]
    %v656 = vld [vmem:[#allocation8 + $0x34] sm:$0xf]
    %v657 = vld [vmem:[#allocation8 + $0x38] sm:$0xf]
    %v658 = vld [vmem:[#allocation8 + $0x3c] sm:$0xf]
    %v660 = vshrl.u32 %v631, 16
    %v662 = vrot.slane %v660, 7
    %v663 = vshll.u32 %v631, 16
    %v665 = vor.u32 %v662, %v663
    %v667 = vshrl.u32 %v632, 16
    %v669 = vrot.slane %v667, 7
    %v670 = vshll.u32 %v632, 16
    %v672 = vor.u32 %v669, %v670
    %v675 = vsel %vm273, 0, %v665
    %v676 = vsel %vm273, 0, %v672
    %v677 = vld [vmem:[#allocation8 + $0x40] sm:$0xf]
    %v678 = vld [vmem:[#allocation8 + $0x44] sm:$0xf]
    %v679 = vld [vmem:[#allocation8 + $0x48] sm:$0xf]
    %v680 = vld [vmem:[#allocation8 + $0x4c] sm:$0xf]
    %v681 = vld [vmem:[#allocation8 + $0x50] sm:$0xf]
    %v682 = vld [vmem:[#allocation8 + $0x54] sm:$0xf]
    %v683 = vld [vmem:[#allocation8 + $0x58] sm:$0xf]
    %v684 = vld [vmem:[#allocation8 + $0x5c] sm:$0xf]
    %v685 = vld [vmem:[#allocation8 + $0x60] sm:$0xf]
    %v686 = vld [vmem:[#allocation8 + $0x64] sm:$0xf]
    %v687 = vld [vmem:[#allocation8 + $0x68] sm:$0xf]
    %v688 = vld [vmem:[#allocation8 + $0x6c] sm:$0xf]
    %v689 = vld [vmem:[#allocation8 + $0x70] sm:$0xf]
    %v690 = vld [vmem:[#allocation8 + $0x74] sm:$0xf]
    %v691 = vld [vmem:[#allocation8 + $0x78] sm:$0xf]
    %v692 = vld [vmem:[#allocation8 + $0x7c] sm:$0xf]
    %v709 = vunpack.c.l.b16 %v677
    %v710 = vunpack.c.l.b16 %v678
    %v711 = vunpack.c.l.b16 %v679
    %v712 = vunpack.c.l.b16 %v680
    %v713 = vunpack.c.l.b16 %v681
    %v714 = vunpack.c.l.b16 %v682
    %v715 = vunpack.c.l.b16 %v683
    %v716 = vunpack.c.l.b16 %v684
    %v717 = vunpack.c.l.b16 %v685
    %v718 = vunpack.c.l.b16 %v686
    %v719 = vunpack.c.l.b16 %v687
    %v720 = vunpack.c.l.b16 %v688
    %v721 = vunpack.c.l.b16 %v689
    %v722 = vunpack.c.l.b16 %v690
    %v723 = vunpack.c.l.b16 %v691
    %v724 = vunpack.c.l.b16 %v692
    %v725 = vpack.c.b16 %v710, %v709
    %v726 = vpack.c.b16 %v712, %v711
    %v727 = vpack.c.b16 %v714, %v713
    %v728 = vpack.c.b16 %v716, %v715
    %v729 = vpack.c.b16 %v718, %v717
    %v730 = vpack.c.b16 %v720, %v719
    %v731 = vpack.c.b16 %v722, %v721
    %v732 = vpack.c.b16 %v724, %v723
    %741 = vmatprep.subr.bf16.mxu0 0
    %742 = vmatpush1.bf16.msra.mxu0 %v725
    %743 = vmatprep.subr.bf16.mxu0 0
    %744 = vmatpush1.bf16.msra.mxu0 %v726
    %745 = vmatprep.subr.bf16.mxu0 0
    %746 = vmatpush1.bf16.msra.mxu0 %v727
    %747 = vmatprep.subr.bf16.mxu0 0
    %748 = vmatpush1.bf16.msra.mxu0 %v728
    %749 = vmatprep.subr.bf16.mxu0 0
    %750 = vmatpush1.bf16.msra.mxu0 %v729
    %751 = vmatprep.subr.bf16.mxu0 0
    %752 = vmatpush1.bf16.msra.mxu0 %v730
    %753 = vmatprep.subr.bf16.mxu0 0
    %754 = vmatpush1.bf16.msra.mxu0 %v731
    %755 = vmatprep.subr.bf16.mxu0 0
    %756 = vmatpush1.bf16.msra.mxu0 %v732
    %757 = vmatprep.subr.bf16.mxu0 0
    %758 = vmatpush1.bf16.msra.mxu0 0
    %759 = vmatprep.subr.bf16.mxu0 0
    %760 = vmatpush1.bf16.msra.mxu0 0
    %761 = vmatprep.subr.bf16.mxu0 0
    %762 = vmatpush1.bf16.msra.mxu0 0
    %763 = vmatprep.subr.bf16.mxu0 0
    %764 = vmatpush1.bf16.msra.mxu0 0
    %765 = vmatprep.subr.bf16.mxu0 0
    %766 = vmatpush1.bf16.msra.mxu0 0
    %767 = vmatprep.subr.bf16.mxu0 0
    %768 = vmatpush1.bf16.msra.mxu0 0
    %769 = vmatprep.subr.bf16.mxu0 0
    %770 = vmatpush1.bf16.msra.mxu0 0
    %771 = vmatprep.subr.bf16.mxu0 0
    %772 = vmatpush1.bf16.msra.mxu0 0
    %773 = vmatprep.mubr.bf16.mxu0 0
    %774 = vmatmul.mubr.bf16.gmra.mrb[0].mxu0 %v675
    %v775 = vpop.f32.mrb[0].mxu0
    %v776 = vadd.f32 0.0, %v775
    %v777 = vpop.f32.mrb[0].mxu0
    %v778 = vpop.f32.mrb[0].mxu0
    %v779 = vadd.f32 0.0, %v778
    %v780 = vpop.f32.mrb[0].mxu0
    %781 = vmatprep.mubr.bf16.mxu0 0
    %782 = vmatmul.mubr.bf16.gmra.mrb[0].mxu0 %v676
    %v783 = vpop.f32.mrb[0].mxu0
    %v784 = vadd.f32 0.0, %v783
    %v785 = vpop.f32.mrb[0].mxu0
    %v786 = vpop.f32.mrb[0].mxu0
    %v787 = vadd.f32 0.0, %v786
    %v788 = vpop.f32.mrb[0].mxu0
    %789 = vdwg.mxu0
    %v806 = vunpack.c.l.b16 %v643
    %v807 = vunpack.c.l.b16 %v644
    %v808 = vunpack.c.l.b16 %v645
    %v809 = vunpack.c.l.b16 %v646
    %v810 = vunpack.c.l.b16 %v647
    %v811 = vunpack.c.l.b16 %v648
    %v812 = vunpack.c.l.b16 %v649
    %v813 = vunpack.c.l.b16 %v650
    %v814 = vunpack.c.l.b16 %v651
    %v815 = vunpack.c.l.b16 %v652
    %v816 = vunpack.c.l.b16 %v653
    %v817 = vunpack.c.l.b16 %v654
    %v818 = vunpack.c.l.b16 %v655
    %v819 = vunpack.c.l.b16 %v656
    %v820 = vunpack.c.l.b16 %v657
    %v821 = vunpack.c.l.b16 %v658
    %v822 = vpack.c.b16 %v807, %v806
    %v823 = vpack.c.b16 %v809, %v808
    %v824 = vpack.c.b16 %v811, %v810
    %v825 = vpack.c.b16 %v813, %v812
    %v826 = vpack.c.b16 %v815, %v814
    %v827 = vpack.c.b16 %v817, %v816
    %v828 = vpack.c.b16 %v819, %v818
    %v829 = vpack.c.b16 %v821, %v820
    %838 = vmatprep.subr.bf16.mxu0 0
    %839 = vmatpush1.bf16.msra.mxu0 %v822
    %840 = vmatprep.subr.bf16.mxu0 0
    %841 = vmatpush1.bf16.msra.mxu0 %v823
    %842 = vmatprep.subr.bf16.mxu0 0
    %843 = vmatpush1.bf16.msra.mxu0 %v824
    %844 = vmatprep.subr.bf16.mxu0 0
    %845 = vmatpush1.bf16.msra.mxu0 %v825
    %846 = vmatprep.subr.bf16.mxu0 0
    %847 = vmatpush1.bf16.msra.mxu0 %v826
    %848 = vmatprep.subr.bf16.mxu0 0
    %849 = vmatpush1.bf16.msra.mxu0 %v827
    %850 = vmatprep.subr.bf16.mxu0 0
    %851 = vmatpush1.bf16.msra.mxu0 %v828
    %852 = vmatprep.subr.bf16.mxu0 0
    %853 = vmatpush1.bf16.msra.mxu0 %v829
    %854 = vmatprep.subr.bf16.mxu0 0
    %855 = vmatpush1.bf16.msra.mxu0 0
    %856 = vmatprep.subr.bf16.mxu0 0
    %857 = vmatpush1.bf16.msra.mxu0 0
    %858 = vmatprep.subr.bf16.mxu0 0
    %859 = vmatpush1.bf16.msra.mxu0 0
    %860 = vmatprep.subr.bf16.mxu0 0
    %861 = vmatpush1.bf16.msra.mxu0 0
    %862 = vmatprep.subr.bf16.mxu0 0
    %863 = vmatpush1.bf16.msra.mxu0 0
    %864 = vmatprep.subr.bf16.mxu0 0
    %865 = vmatpush1.bf16.msra.mxu0 0
    %866 = vmatprep.subr.bf16.mxu0 0
    %867 = vmatpush1.bf16.msra.mxu0 0
    %868 = vmatprep.subr.bf16.mxu0 0
    %869 = vmatpush1.bf16.msra.mxu0 0
    %870 = vmatprep.mubr.bf16.mxu0 0
    %871 = vmatmul.mubr.bf16.gmra.mrb[0].mxu0 %v638
    %v872 = vpop.f32.mrb[0].mxu0
    %v873 = vadd.f32 %v776, %v872
    %v874 = vpop.f32.mrb[0].mxu0
    %v875 = vpop.f32.mrb[0].mxu0
    %v876 = vadd.f32 %v779, %v875
    %v877 = vpop.f32.mrb[0].mxu0
    %878 = vmatprep.mubr.bf16.mxu0 0
    %879 = vmatmul.mubr.bf16.gmra.mrb[0].mxu0 %v641
    %v880 = vpop.f32.mrb[0].mxu0
    %v881 = vadd.f32 %v784, %v880
    %v882 = vpop.f32.mrb[0].mxu0
    %v883 = vpop.f32.mrb[0].mxu0
    %v884 = vadd.f32 %v787, %v883
    %v885 = vpop.f32.mrb[0].mxu0
    %886 = vdwg.mxu0
    %v887 = vld [vmem:[#allocation8 + $0x80] sm:$0xf]
    %v888 = vld [vmem:[#allocation8 + $0x84] sm:$0xf]
    %v889 = vld [vmem:[#allocation8 + $0x88] sm:$0xf]
    %v890 = vld [vmem:[#allocation8 + $0x8c] sm:$0xf]
    %v891 = vld [vmem:[#allocation8 + $0x90] sm:$0xf]
    %v892 = vld [vmem:[#allocation8 + $0x94] sm:$0xf]
    %v893 = vld [vmem:[#allocation8 + $0x98] sm:$0xf]
    %v894 = vld [vmem:[#allocation8 + $0x9c] sm:$0xf]
    %v895 = vld [vmem:[#allocation8 + $0xa0] sm:$0xf]
    %v896 = vld [vmem:[#allocation8 + $0xa4] sm:$0xf]
    %v897 = vld [vmem:[#allocation8 + $0xa8] sm:$0xf]
    %v898 = vld [vmem:[#allocation8 + $0xac] sm:$0xf]
    %v899 = vld [vmem:[#allocation8 + $0xb0] sm:$0xf]
    %v900 = vld [vmem:[#allocation8 + $0xb4] sm:$0xf]
    %v901 = vld [vmem:[#allocation8 + $0xb8] sm:$0xf]
    %v902 = vld [vmem:[#allocation8 + $0xbc] sm:$0xf]
    %v919 = vunpack.c.l.b16 %v887
    %v920 = vunpack.c.l.b16 %v888
    %v921 = vunpack.c.l.b16 %v889
    %v922 = vunpack.c.l.b16 %v890
    %v923 = vunpack.c.l.b16 %v891
    %v924 = vunpack.c.l.b16 %v892
    %v925 = vunpack.c.l.b16 %v893
    %v926 = vunpack.c.l.b16 %v894
    %v927 = vunpack.c.l.b16 %v895
    %v928 = vunpack.c.l.b16 %v896
    %v929 = vunpack.c.l.b16 %v897
    %v930 = vunpack.c.l.b16 %v898
    %v931 = vunpack.c.l.b16 %v899
    %v932 = vunpack.c.l.b16 %v900
    %v933 = vunpack.c.l.b16 %v901
    %v934 = vunpack.c.l.b16 %v902
    %v935 = vpack.c.b16 %v920, %v919
    %v936 = vpack.c.b16 %v922, %v921
    %v937 = vpack.c.b16 %v924, %v923
    %v938 = vpack.c.b16 %v926, %v925
    %v939 = vpack.c.b16 %v928, %v927
    %v940 = vpack.c.b16 %v930, %v929
    %v941 = vpack.c.b16 %v932, %v931
    %v942 = vpack.c.b16 %v934, %v933
    %951 = vmatprep.subr.bf16.mxu0 0
    %952 = vmatpush1.bf16.msra.mxu0 %v935
    %953 = vmatprep.subr.bf16.mxu0 0
    %954 = vmatpush1.bf16.msra.mxu0 %v936
    %955 = vmatprep.subr.bf16.mxu0 0
    %956 = vmatpush1.bf16.msra.mxu0 %v937
    %957 = vmatprep.subr.bf16.mxu0 0
    %958 = vmatpush1.bf16.msra.mxu0 %v938
    %959 = vmatprep.subr.bf16.mxu0 0
    %960 = vmatpush1.bf16.msra.mxu0 %v939
    %961 = vmatprep.subr.bf16.mxu0 0
    %962 = vmatpush1.bf16.msra.mxu0 %v940
    %963 = vmatprep.subr.bf16.mxu0 0
    %964 = vmatpush1.bf16.msra.mxu0 %v941
    %965 = vmatprep.subr.bf16.mxu0 0
    %966 = vmatpush1.bf16.msra.mxu0 %v942
    %967 = vmatprep.subr.bf16.mxu0 0
    %968 = vmatpush1.bf16.msra.mxu0 0
    %969 = vmatprep.subr.bf16.mxu0 0
    %970 = vmatpush1.bf16.msra.mxu0 0
    %971 = vmatprep.subr.bf16.mxu0 0
    %972 = vmatpush1.bf16.msra.mxu0 0
    %973 = vmatprep.subr.bf16.mxu0 0
    %974 = vmatpush1.bf16.msra.mxu0 0
    %975 = vmatprep.subr.bf16.mxu0 0
    %976 = vmatpush1.bf16.msra.mxu0 0
    %977 = vmatprep.subr.bf16.mxu0 0
    %978 = vmatpush1.bf16.msra.mxu0 0
    %979 = vmatprep.subr.bf16.mxu0 0
    %980 = vmatpush1.bf16.msra.mxu0 0
    %981 = vmatprep.subr.bf16.mxu0 0
    %982 = vmatpush1.bf16.msra.mxu0 0
    %983 = vmatprep.mubr.bf16.mxu0 0
    %984 = vmatmul.mubr.bf16.gmra.mrb[0].mxu0 %v631
    %v985 = vpop.f32.mrb[0].mxu0
    %v986 = vadd.f32 0.0, %v985
    %v987 = vpop.f32.mrb[0].mxu0
    %v988 = vpop.f32.mrb[0].mxu0
    %v989 = vadd.f32 0.0, %v988
    %v990 = vpop.f32.mrb[0].mxu0
    %991 = vmatprep.mubr.bf16.mxu0 0
    %992 = vmatmul.mubr.bf16.gmra.mrb[0].mxu0 %v632
    %v993 = vpop.f32.mrb[0].mxu0
    %v994 = vadd.f32 0.0, %v993
    %v995 = vpop.f32.mrb[0].mxu0
    %v996 = vpop.f32.mrb[0].mxu0
    %v997 = vadd.f32 0.0, %v996
    %v998 = vpop.f32.mrb[0].mxu0
    %999 = vdwg.mxu0
    %v1000 = vadd.f32 %v873, %v986
    %v1001 = vadd.f32 %v876, %v989
    %v1002 = vadd.f32 %v881, %v994
    %v1003 = vadd.f32 %v884, %v997
    %v1004 = vld [vmem:[#allocation10] sm:$0x1]
    %v1006 = vlaneseq
    %v1007 = vshrl.u32 %v1006, 7
    %v1008 = vsub.s32 0, %v1007
    %v1009 = vrot.slane %v1004, %v1008
    %v1011 = vmul.f32 %v1000, %v1009
    %v1012 = vmul.f32 %v1001, %v1009
    %v1013 = vmul.f32 %v1002, %v1009
    %v1014 = vmul.f32 %v1003, %v1009
    %v1015 = vld [vmem:[#allocation11] sm:$0x1]
    %v1017 = vlaneseq
    %v1018 = vshrl.u32 %v1017, 7
    %v1019 = vsub.s32 0, %v1018
    %v1020 = vrot.slane %v1015, %v1019
    %v1022 = vadd.f32 %v1011, %v1020
    %v1023 = vadd.f32 %v1012, %v1020
    %v1024 = vadd.f32 %v1013, %v1020
    %v1025 = vadd.f32 %v1014, %v1020
    %v1026 = vmax.f32 %v1022, 0.0
    %v1027 = vmax.f32 %v1023, 0.0
    %v1028 = vmax.f32 %v1024, 0.0
    %v1029 = vmax.f32 %v1025, 0.0
    %v1030 = vld [vmem:[#allocation13] sm:$0xf]
    %v1031 = vld [vmem:[#allocation13 + $0x4] sm:$0xf]
    %v1032 = vld [vmem:[#allocation13 + $0x8] sm:$0xf]
    %v1033 = vld [vmem:[#allocation13 + $0xc] sm:$0xf]
    %v1034 = vld [vmem:[#allocation13 + $0x10] sm:$0xf]
    %v1035 = vld [vmem:[#allocation13 + $0x14] sm:$0xf]
    %v1036 = vld [vmem:[#allocation13 + $0x18] sm:$0xf]
    %v1037 = vld [vmem:[#allocation13 + $0x1c] sm:$0xf]
    %v1038 = vld [vmem:[#allocation13 + $0x20] sm:$0xf]
    %v1039 = vld [vmem:[#allocation13 + $0x24] sm:$0xf]
    %v1040 = vld [vmem:[#allocation13 + $0x28] sm:$0xf]
    %v1041 = vld [vmem:[#allocation13 + $0x2c] sm:$0xf]
    %v1042 = vld [vmem:[#allocation13 + $0x30] sm:$0xf]
    %v1043 = vld [vmem:[#allocation13 + $0x34] sm:$0xf]
    %v1044 = vld [vmem:[#allocation13 + $0x38] sm:$0xf]
    %v1045 = vld [vmem:[#allocation13 + $0x3c] sm:$0xf]
    %v1046 = vld [vmem:[#allocation14] sm:$0x1]
    %v1048 = vlaneseq
    %v1049 = vshrl.u32 %v1048, 7
    %v1050 = vsub.s32 0, %v1049
    %v1051 = vrot.slane %v1046, %v1050
    %v1069 = vunpack.c.l.b16 %v1030
    %v1070 = vunpack.c.l.b16 %v1031
    %v1071 = vunpack.c.l.b16 %v1032
    %v1072 = vunpack.c.l.b16 %v1033
    %v1073 = vunpack.c.l.b16 %v1034
    %v1074 = vunpack.c.l.b16 %v1035
    %v1075 = vunpack.c.l.b16 %v1036
    %v1076 = vunpack.c.l.b16 %v1037
    %v1077 = vunpack.c.l.b16 %v1038
    %v1078 = vunpack.c.l.b16 %v1039
    %v1079 = vunpack.c.l.b16 %v1040
    %v1080 = vunpack.c.l.b16 %v1041
    %v1081 = vunpack.c.l.b16 %v1042
    %v1082 = vunpack.c.l.b16 %v1043
    %v1083 = vunpack.c.l.b16 %v1044
    %v1084 = vunpack.c.l.b16 %v1045
    %v1085 = vpack.c.b16 %v1070, %v1069
    %v1086 = vpack.c.b16 %v1072, %v1071
    %v1087 = vpack.c.b16 %v1074, %v1073
    %v1088 = vpack.c.b16 %v1076, %v1075
    %v1089 = vpack.c.b16 %v1078, %v1077
    %v1090 = vpack.c.b16 %v1080, %v1079
    %v1091 = vpack.c.b16 %v1082, %v1081
    %v1092 = vpack.c.b16 %v1084, %v1083
    %1101 = vmatprep.subr.bf16.mxu0 0
    %1102 = vmatpush1.bf16.msra.mxu0 %v1085
    %1103 = vmatprep.subr.bf16.mxu0 0
    %1104 = vmatpush1.bf16.msra.mxu0 %v1086
    %1105 = vmatprep.subr.bf16.mxu0 0
    %1106 = vmatpush1.bf16.msra.mxu0 %v1087
    %1107 = vmatprep.subr.bf16.mxu0 0
    %1108 = vmatpush1.bf16.msra.mxu0 %v1088
    %1109 = vmatprep.subr.bf16.mxu0 0
    %1110 = vmatpush1.bf16.msra.mxu0 %v1089
    %1111 = vmatprep.subr.bf16.mxu0 0
    %1112 = vmatpush1.bf16.msra.mxu0 %v1090
    %1113 = vmatprep.subr.bf16.mxu0 0
    %1114 = vmatpush1.bf16.msra.mxu0 %v1091
    %1115 = vmatprep.subr.bf16.mxu0 0
    %1116 = vmatpush1.bf16.msra.mxu0 %v1092
    %1117 = vmatprep.subr.bf16.mxu0 0
    %1118 = vmatpush1.bf16.msra.mxu0 0
    %1119 = vmatprep.subr.bf16.mxu0 0
    %1120 = vmatpush1.bf16.msra.mxu0 0
    %1121 = vmatprep.subr.bf16.mxu0 0
    %1122 = vmatpush1.bf16.msra.mxu0 0
    %1123 = vmatprep.subr.bf16.mxu0 0
    %1124 = vmatpush1.bf16.msra.mxu0 0
    %1125 = vmatprep.subr.bf16.mxu0 0
    %1126 = vmatpush1.bf16.msra.mxu0 0
    %1127 = vmatprep.subr.bf16.mxu0 0
    %1128 = vmatpush1.bf16.msra.mxu0 0
    %1129 = vmatprep.subr.bf16.mxu0 0
    %1130 = vmatpush1.bf16.msra.mxu0 0
    %1131 = vmatprep.subr.bf16.mxu0 0
    %1132 = vmatpush1.bf16.msra.mxu0 0
    %1133 = vmatprep.mubr.bf16.mxu0 0
    %1134 = vmatmul.mubr.bf16.gmra.mrb[0].mxu0 %v227
    %v1135 = vpop.f32.mrb[0].mxu0
    %v1136 = vadd.f32 %v1051, %v1135
    %v1137 = vpop.f32.mrb[0].mxu0
    %v1138 = vpop.f32.mrb[0].mxu0
    %v1139 = vadd.f32 %v1051, %v1138
    %v1140 = vpop.f32.mrb[0].mxu0
    %1141 = vmatprep.mubr.bf16.mxu0 0
    %1142 = vmatmul.mubr.bf16.gmra.mrb[0].mxu0 %v228
    %v1143 = vpop.f32.mrb[0].mxu0
    %v1144 = vadd.f32 %v1051, %v1143
    %v1145 = vpop.f32.mrb[0].mxu0
    %v1146 = vpop.f32.mrb[0].mxu0
    %v1147 = vadd.f32 %v1051, %v1146
    %v1148 = vpop.f32.mrb[0].mxu0
    %1149 = vdwg.mxu0
    %v1150 = vadd.f32 %v1026, %v1136
    %v1151 = vadd.f32 %v1027, %v1139
    %v1152 = vadd.f32 %v1028, %v1144
    %v1153 = vadd.f32 %v1029, %v1147
    %v1154 = vmax.f32 %v1150, 0.0
    %v1155 = vmax.f32 %v1151, 0.0
    %v1156 = vmax.f32 %v1152, 0.0
    %v1157 = vmax.f32 %v1153, 0.0
    %v1158 = vpack.c.bf16 %v1155, %v1154
    %v1159 = vpack.c.bf16 %v1157, %v1156
    %v1162 = vrot.slane %v1158, 6
    %v1163 = vrot.slane %v1159, 6
    %vm1164 = vcmask 1041408
    %v1166 = vsel %vm1164, 0, %v1162
    %v1169 = vsel %vm1164, 0, %v1163
    %v1171 = vld [vmem:[#allocation16] sm:$0xf]
    %v1172 = vld [vmem:[#allocation16 + $0x4] sm:$0xf]
    %v1173 = vld [vmem:[#allocation16 + $0x8] sm:$0xf]
    %v1174 = vld [vmem:[#allocation16 + $0xc] sm:$0xf]
    %v1175 = vld [vmem:[#allocation16 + $0x10] sm:$0xf]
    %v1176 = vld [vmem:[#allocation16 + $0x14] sm:$0xf]
    %v1177 = vld [vmem:[#allocation16 + $0x18] sm:$0xf]
    %v1178 = vld [vmem:[#allocation16 + $0x1c] sm:$0xf]
    %v1179 = vld [vmem:[#allocation16 + $0x20] sm:$0xf]
    %v1180 = vld [vmem:[#allocation16 + $0x24] sm:$0xf]
    %v1181 = vld [vmem:[#allocation16 + $0x28] sm:$0xf]
    %v1182 = vld [vmem:[#allocation16 + $0x2c] sm:$0xf]
    %v1183 = vld [vmem:[#allocation16 + $0x30] sm:$0xf]
    %v1184 = vld [vmem:[#allocation16 + $0x34] sm:$0xf]
    %v1185 = vld [vmem:[#allocation16 + $0x38] sm:$0xf]
    %v1186 = vld [vmem:[#allocation16 + $0x3c] sm:$0xf]
    %v1187 = vrot.slane %v1158, 7
    %v1188 = vrot.slane %v1159, 7
    %v1190 = vsel %vm231, 0, %v1187
    %v1193 = vsel %vm231, 0, %v1188
    %v1195 = vld [vmem:[#allocation16 + $0x40] sm:$0xf]
    %v1196 = vld [vmem:[#allocation16 + $0x44] sm:$0xf]
    %v1197 = vld [vmem:[#allocation16 + $0x48] sm:$0xf]
    %v1198 = vld [vmem:[#allocation16 + $0x4c] sm:$0xf]
    %v1199 = vld [vmem:[#allocation16 + $0x50] sm:$0xf]
    %v1200 = vld [vmem:[#allocation16 + $0x54] sm:$0xf]
    %v1201 = vld [vmem:[#allocation16 + $0x58] sm:$0xf]
    %v1202 = vld [vmem:[#allocation16 + $0x5c] sm:$0xf]
    %v1203 = vld [vmem:[#allocation16 + $0x60] sm:$0xf]
    %v1204 = vld [vmem:[#allocation16 + $0x64] sm:$0xf]
    %v1205 = vld [vmem:[#allocation16 + $0x68] sm:$0xf]
    %v1206 = vld [vmem:[#allocation16 + $0x6c] sm:$0xf]
    %v1207 = vld [vmem:[#allocation16 + $0x70] sm:$0xf]
    %v1208 = vld [vmem:[#allocation16 + $0x74] sm:$0xf]
    %v1209 = vld [vmem:[#allocation16 + $0x78] sm:$0xf]
    %v1210 = vld [vmem:[#allocation16 + $0x7c] sm:$0xf]
    %v1227 = vunpack.c.l.b16 %v1195
    %v1228 = vunpack.c.l.b16 %v1196
    %v1229 = vunpack.c.l.b16 %v1197
    %v1230 = vunpack.c.l.b16 %v1198
    %v1231 = vunpack.c.l.b16 %v1199
    %v1232 = vunpack.c.l.b16 %v1200
    %v1233 = vunpack.c.l.b16 %v1201
    %v1234 = vunpack.c.l.b16 %v1202
    %v1235 = vunpack.c.l.b16 %v1203
    %v1236 = vunpack.c.l.b16 %v1204
    %v1237 = vunpack.c.l.b16 %v1205
    %v1238 = vunpack.c.l.b16 %v1206
    %v1239 = vunpack.c.l.b16 %v1207
    %v1240 = vunpack.c.l.b16 %v1208
    %v1241 = vunpack.c.l.b16 %v1209
    %v1242 = vunpack.c.l.b16 %v1210
    %v1243 = vpack.c.b16 %v1228, %v1227
    %v1244 = vpack.c.b16 %v1230, %v1229
    %v1245 = vpack.c.b16 %v1232, %v1231
    %v1246 = vpack.c.b16 %v1234, %v1233
    %v1247 = vpack.c.b16 %v1236, %v1235
    %v1248 = vpack.c.b16 %v1238, %v1237
    %v1249 = vpack.c.b16 %v1240, %v1239
    %v1250 = vpack.c.b16 %v1242, %v1241
    %1259 = vmatprep.subr.bf16.mxu0 0
    %1260 = vmatpush1.bf16.msra.mxu0 %v1243
    %1261 = vmatprep.subr.bf16.mxu0 0
    %1262 = vmatpush1.bf16.msra.mxu0 %v1244
    %1263 = vmatprep.subr.bf16.mxu0 0
    %1264 = vmatpush1.bf16.msra.mxu0 %v1245
    %1265 = vmatprep.subr.bf16.mxu0 0
    %1266 = vmatpush1.bf16.msra.mxu0 %v1246
    %1267 = vmatprep.subr.bf16.mxu0 0
    %1268 = vmatpush1.bf16.msra.mxu0 %v1247
    %1269 = vmatprep.subr.bf16.mxu0 0
    %1270 = vmatpush1.bf16.msra.mxu0 %v1248
    %1271 = vmatprep.subr.bf16.mxu0 0
    %1272 = vmatpush1.bf16.msra.mxu0 %v1249
    %1273 = vmatprep.subr.bf16.mxu0 0
    %1274 = vmatpush1.bf16.msra.mxu0 %v1250
    %1275 = vmatprep.subr.bf16.mxu0 0
    %1276 = vmatpush1.bf16.msra.mxu0 0
    %1277 = vmatprep.subr.bf16.mxu0 0
    %1278 = vmatpush1.bf16.msra.mxu0 0
    %1279 = vmatprep.subr.bf16.mxu0 0
    %1280 = vmatpush1.bf16.msra.mxu0 0
    %1281 = vmatprep.subr.bf16.mxu0 0
    %1282 = vmatpush1.bf16.msra.mxu0 0
    %1283 = vmatprep.subr.bf16.mxu0 0
    %1284 = vmatpush1.bf16.msra.mxu0 0
    %1285 = vmatprep.subr.bf16.mxu0 0
    %1286 = vmatpush1.bf16.msra.mxu0 0
    %1287 = vmatprep.subr.bf16.mxu0 0
    %1288 = vmatpush1.bf16.msra.mxu0 0
    %1289 = vmatprep.subr.bf16.mxu0 0
    %1290 = vmatpush1.bf16.msra.mxu0 0
    %1291 = vmatprep.mubr.bf16.mxu0 0
    %1292 = vmatmul.mubr.bf16.gmra.mrb[0].mxu0 %v1190
    %v1293 = vpop.f32.mrb[0].mxu0
    %v1294 = vadd.f32 0.0, %v1293
    %v1295 = vpop.f32.mrb[0].mxu0
    %v1296 = vpop.f32.mrb[0].mxu0
    %v1297 = vadd.f32 0.0, %v1296
    %v1298 = vpop.f32.mrb[0].mxu0
    %1299 = vmatprep.mubr.bf16.mxu0 0
    %1300 = vmatmul.mubr.bf16.gmra.mrb[0].mxu0 %v1193
    %v1301 = vpop.f32.mrb[0].mxu0
    %v1302 = vadd.f32 0.0, %v1301
    %v1303 = vpop.f32.mrb[0].mxu0
    %v1304 = vpop.f32.mrb[0].mxu0
    %v1305 = vadd.f32 0.0, %v1304
    %v1306 = vpop.f32.mrb[0].mxu0
    %1307 = vdwg.mxu0
    %v1324 = vunpack.c.l.b16 %v1171
    %v1325 = vunpack.c.l.b16 %v1172
    %v1326 = vunpack.c.l.b16 %v1173
    %v1327 = vunpack.c.l.b16 %v1174
    %v1328 = vunpack.c.l.b16 %v1175
    %v1329 = vunpack.c.l.b16 %v1176
    %v1330 = vunpack.c.l.b16 %v1177
    %v1331 = vunpack.c.l.b16 %v1178
    %v1332 = vunpack.c.l.b16 %v1179
    %v1333 = vunpack.c.l.b16 %v1180
    %v1334 = vunpack.c.l.b16 %v1181
    %v1335 = vunpack.c.l.b16 %v1182
    %v1336 = vunpack.c.l.b16 %v1183
    %v1337 = vunpack.c.l.b16 %v1184
    %v1338 = vunpack.c.l.b16 %v1185
    %v1339 = vunpack.c.l.b16 %v1186
    %v1340 = vpack.c.b16 %v1325, %v1324
    %v1341 = vpack.c.b16 %v1327, %v1326
    %v1342 = vpack.c.b16 %v1329, %v1328
    %v1343 = vpack.c.b16 %v1331, %v1330
    %v1344 = vpack.c.b16 %v1333, %v1332
    %v1345 = vpack.c.b16 %v1335, %v1334
    %v1346 = vpack.c.b16 %v1337, %v1336
    %v1347 = vpack.c.b16 %v1339, %v1338
    %1356 = vmatprep.subr.bf16.mxu0 0
    %1357 = vmatpush1.bf16.msra.mxu0 %v1340
    %1358 = vmatprep.subr.bf16.mxu0 0
    %1359 = vmatpush1.bf16.msra.mxu0 %v1341
    %1360 = vmatprep.subr.bf16.mxu0 0
    %1361 = vmatpush1.bf16.msra.mxu0 %v1342
    %1362 = vmatprep.subr.bf16.mxu0 0
    %1363 = vmatpush1.bf16.msra.mxu0 %v1343
    %1364 = vmatprep.subr.bf16.mxu0 0
    %1365 = vmatpush1.bf16.msra.mxu0 %v1344
    %1366 = vmatprep.subr.bf16.mxu0 0
    %1367 = vmatpush1.bf16.msra.mxu0 %v1345
    %1368 = vmatprep.subr.bf16.mxu0 0
    %1369 = vmatpush1.bf16.msra.mxu0 %v1346
    %1370 = vmatprep.subr.bf16.mxu0 0
    %1371 = vmatpush1.bf16.msra.mxu0 %v1347
    %1372 = vmatprep.subr.bf16.mxu0 0
    %1373 = vmatpush1.bf16.msra.mxu0 0
    %1374 = vmatprep.subr.bf16.mxu0 0
    %1375 = vmatpush1.bf16.msra.mxu0 0
    %1376 = vmatprep.subr.bf16.mxu0 0
    %1377 = vmatpush1.bf16.msra.mxu0 0
    %1378 = vmatprep.subr.bf16.mxu0 0
    %1379 = vmatpush1.bf16.msra.mxu0 0
    %1380 = vmatprep.subr.bf16.mxu0 0
    %1381 = vmatpush1.bf16.msra.mxu0 0
    %1382 = vmatprep.subr.bf16.mxu0 0
    %1383 = vmatpush1.bf16.msra.mxu0 0
    %1384 = vmatprep.subr.bf16.mxu0 0
    %1385 = vmatpush1.bf16.msra.mxu0 0
    %1386 = vmatprep.subr.bf16.mxu0 0
    %1387 = vmatpush1.bf16.msra.mxu0 0
    %1388 = vmatprep.mubr.bf16.mxu0 0
    %1389 = vmatmul.mubr.bf16.gmra.mrb[0].mxu0 %v1166
    %v1390 = vpop.f32.mrb[0].mxu0
    %v1391 = vadd.f32 %v1294, %v1390
    %v1392 = vpop.f32.mrb[0].mxu0
    %v1393 = vpop.f32.mrb[0].mxu0
    %v1394 = vadd.f32 %v1297, %v1393
    %v1395 = vpop.f32.mrb[0].mxu0
    %1396 = vmatprep.mubr.bf16.mxu0 0
    %1397 = vmatmul.mubr.bf16.gmra.mrb[0].mxu0 %v1169
    %v1398 = vpop.f32.mrb[0].mxu0
    %v1399 = vadd.f32 %v1302, %v1398
    %v1400 = vpop.f32.mrb[0].mxu0
    %v1401 = vpop.f32.mrb[0].mxu0
    %v1402 = vadd.f32 %v1305, %v1401
    %v1403 = vpop.f32.mrb[0].mxu0
    %1404 = vdwg.mxu0
    %v1405 = vld [vmem:[#allocation16 + $0x80] sm:$0xf]
    %v1406 = vld [vmem:[#allocation16 + $0x84] sm:$0xf]
    %v1407 = vld [vmem:[#allocation16 + $0x88] sm:$0xf]
    %v1408 = vld [vmem:[#allocation16 + $0x8c] sm:$0xf]
    %v1409 = vld [vmem:[#allocation16 + $0x90] sm:$0xf]
    %v1410 = vld [vmem:[#allocation16 + $0x94] sm:$0xf]
    %v1411 = vld [vmem:[#allocation16 + $0x98] sm:$0xf]
    %v1412 = vld [vmem:[#allocation16 + $0x9c] sm:$0xf]
    %v1413 = vld [vmem:[#allocation16 + $0xa0] sm:$0xf]
    %v1414 = vld [vmem:[#allocation16 + $0xa4] sm:$0xf]
    %v1415 = vld [vmem:[#allocation16 + $0xa8] sm:$0xf]
    %v1416 = vld [vmem:[#allocation16 + $0xac] sm:$0xf]
    %v1417 = vld [vmem:[#allocation16 + $0xb0] sm:$0xf]
    %v1418 = vld [vmem:[#allocation16 + $0xb4] sm:$0xf]
    %v1419 = vld [vmem:[#allocation16 + $0xb8] sm:$0xf]
    %v1420 = vld [vmem:[#allocation16 + $0xbc] sm:$0xf]
    %v1437 = vunpack.c.l.b16 %v1405
    %v1438 = vunpack.c.l.b16 %v1406
    %v1439 = vunpack.c.l.b16 %v1407
    %v1440 = vunpack.c.l.b16 %v1408
    %v1441 = vunpack.c.l.b16 %v1409
    %v1442 = vunpack.c.l.b16 %v1410
    %v1443 = vunpack.c.l.b16 %v1411
    %v1444 = vunpack.c.l.b16 %v1412
    %v1445 = vunpack.c.l.b16 %v1413
    %v1446 = vunpack.c.l.b16 %v1414
    %v1447 = vunpack.c.l.b16 %v1415
    %v1448 = vunpack.c.l.b16 %v1416
    %v1449 = vunpack.c.l.b16 %v1417
    %v1450 = vunpack.c.l.b16 %v1418
    %v1451 = vunpack.c.l.b16 %v1419
    %v1452 = vunpack.c.l.b16 %v1420
    %v1453 = vpack.c.b16 %v1438, %v1437
    %v1454 = vpack.c.b16 %v1440, %v1439
    %v1455 = vpack.c.b16 %v1442, %v1441
    %v1456 = vpack.c.b16 %v1444, %v1443
    %v1457 = vpack.c.b16 %v1446, %v1445
    %v1458 = vpack.c.b16 %v1448, %v1447
    %v1459 = vpack.c.b16 %v1450, %v1449
    %v1460 = vpack.c.b16 %v1452, %v1451
    %1469 = vmatprep.subr.bf16.mxu0 0
    %1470 = vmatpush1.bf16.msra.mxu0 %v1453
    %1471 = vmatprep.subr.bf16.mxu0 0
    %1472 = vmatpush1.bf16.msra.mxu0 %v1454
    %1473 = vmatprep.subr.bf16.mxu0 0
    %1474 = vmatpush1.bf16.msra.mxu0 %v1455
    %1475 = vmatprep.subr.bf16.mxu0 0
    %1476 = vmatpush1.bf16.msra.mxu0 %v1456
    %1477 = vmatprep.subr.bf16.mxu0 0
    %1478 = vmatpush1.bf16.msra.mxu0 %v1457
    %1479 = vmatprep.subr.bf16.mxu0 0
    %1480 = vmatpush1.bf16.msra.mxu0 %v1458
    %1481 = vmatprep.subr.bf16.mxu0 0
    %1482 = vmatpush1.bf16.msra.mxu0 %v1459
    %1483 = vmatprep.subr.bf16.mxu0 0
    %1484 = vmatpush1.bf16.msra.mxu0 %v1460
    %1485 = vmatprep.subr.bf16.mxu0 0
    %1486 = vmatpush1.bf16.msra.mxu0 0
    %1487 = vmatprep.subr.bf16.mxu0 0
    %1488 = vmatpush1.bf16.msra.mxu0 0
    %1489 = vmatprep.subr.bf16.mxu0 0
    %1490 = vmatpush1.bf16.msra.mxu0 0
    %1491 = vmatprep.subr.bf16.mxu0 0
    %1492 = vmatpush1.bf16.msra.mxu0 0
    %1493 = vmatprep.subr.bf16.mxu0 0
    %1494 = vmatpush1.bf16.msra.mxu0 0
    %1495 = vmatprep.subr.bf16.mxu0 0
    %1496 = vmatpush1.bf16.msra.mxu0 0
    %1497 = vmatprep.subr.bf16.mxu0 0
    %1498 = vmatpush1.bf16.msra.mxu0 0
    %1499 = vmatprep.subr.bf16.mxu0 0
    %1500 = vmatpush1.bf16.msra.mxu0 0
    %1501 = vmatprep.mubr.bf16.mxu0 0
    %1502 = vmatmul.mubr.bf16.gmra.mrb[0].mxu0 %v1158
    %v1503 = vpop.f32.mrb[0].mxu0
    %v1504 = vadd.f32 0.0, %v1503
    %v1505 = vpop.f32.mrb[0].mxu0
    %v1506 = vpop.f32.mrb[0].mxu0
    %v1507 = vadd.f32 0.0, %v1506
    %v1508 = vpop.f32.mrb[0].mxu0
    %1509 = vmatprep.mubr.bf16.mxu0 0
    %1510 = vmatmul.mubr.bf16.gmra.mrb[0].mxu0 %v1159
    %v1511 = vpop.f32.mrb[0].mxu0
    %v1512 = vadd.f32 0.0, %v1511
    %v1513 = vpop.f32.mrb[0].mxu0
    %v1514 = vpop.f32.mrb[0].mxu0
    %v1515 = vadd.f32 0.0, %v1514
    %v1516 = vpop.f32.mrb[0].mxu0
    %1517 = vdwg.mxu0
    %v1518 = vadd.f32 %v1391, %v1504
    %v1519 = vadd.f32 %v1394, %v1507
    %v1520 = vadd.f32 %v1399, %v1512
    %v1521 = vadd.f32 %v1402, %v1515
    %v1522 = vld [vmem:[#allocation17] sm:$0x1]
    %v1524 = vlaneseq
    %v1525 = vshrl.u32 %v1524, 7
    %v1526 = vsub.s32 0, %v1525
    %v1527 = vrot.slane %v1522, %v1526
    %v1529 = vmul.f32 %v1518, %v1527
    %v1530 = vmul.f32 %v1519, %v1527
    %v1531 = vmul.f32 %v1520, %v1527
    %v1532 = vmul.f32 %v1521, %v1527
    %v1533 = vld [vmem:[%s11] sm:$0x1]
    %v1535 = vlaneseq
    %v1536 = vshrl.u32 %v1535, 7
    %v1537 = vsub.s32 0, %v1536
    %v1538 = vrot.slane %v1533, %v1537
    %v1540 = vadd.f32 %v1529, %v1538
    %v1541 = vadd.f32 %v1530, %v1538
    %v1542 = vadd.f32 %v1531, %v1538
    %v1543 = vadd.f32 %v1532, %v1538
    %v1544 = vmax.f32 %v1540, 0.0
    %v1545 = vmax.f32 %v1541, 0.0
    %v1546 = vmax.f32 %v1542, 0.0
    %v1547 = vmax.f32 %v1543, 0.0
    %v1548 = vpack.c.bf16 %v1545, %v1544
    %v1549 = vpack.c.bf16 %v1547, %v1546
    %v1552 = vrot.slane %v1548, 6
    %v1553 = vrot.slane %v1549, 6
    %v1555 = vsel %vm1164, 0, %v1552
    %v1558 = vsel %vm1164, 0, %v1553
    %v1560 = vld [vmem:[#allocation19] sm:$0xf]
    %v1561 = vld [vmem:[#allocation19 + $0x4] sm:$0xf]
    %v1562 = vld [vmem:[#allocation19 + $0x8] sm:$0xf]
    %v1563 = vld [vmem:[#allocation19 + $0xc] sm:$0xf]
    %v1564 = vld [vmem:[#allocation19 + $0x10] sm:$0xf]
    %v1565 = vld [vmem:[#allocation19 + $0x14] sm:$0xf]
    %v1566 = vld [vmem:[#allocation19 + $0x18] sm:$0xf]
    %v1567 = vld [vmem:[#allocation19 + $0x1c] sm:$0xf]
    %v1568 = vld [vmem:[#allocation19 + $0x20] sm:$0xf]
    %v1569 = vld [vmem:[#allocation19 + $0x24] sm:$0xf]
    %v1570 = vld [vmem:[#allocation19 + $0x28] sm:$0xf]
    %v1571 = vld [vmem:[#allocation19 + $0x2c] sm:$0xf]
    %v1572 = vld [vmem:[#allocation19 + $0x30] sm:$0xf]
    %v1573 = vld [vmem:[#allocation19 + $0x34] sm:$0xf]
    %v1574 = vld [vmem:[#allocation19 + $0x38] sm:$0xf]
    %v1575 = vld [vmem:[#allocation19 + $0x3c] sm:$0xf]
    %v1576 = vrot.slane %v1548, 7
    %v1577 = vrot.slane %v1549, 7
    %v1579 = vsel %vm231, 0, %v1576
    %v1582 = vsel %vm231, 0, %v1577
    %v1584 = vld [vmem:[#allocation19 + $0x40] sm:$0xf]
    %v1585 = vld [vmem:[#allocation19 + $0x44] sm:$0xf]
    %v1586 = vld [vmem:[#allocation19 + $0x48] sm:$0xf]
    %v1587 = vld [vmem:[#allocation19 + $0x4c] sm:$0xf]
    %v1588 = vld [vmem:[#allocation19 + $0x50] sm:$0xf]
    %v1589 = vld [vmem:[#allocation19 + $0x54] sm:$0xf]
    %v1590 = vld [vmem:[#allocation19 + $0x58] sm:$0xf]
    %v1591 = vld [vmem:[#allocation19 + $0x5c] sm:$0xf]
    %v1592 = vld [vmem:[#allocation19 + $0x60] sm:$0xf]
    %v1593 = vld [vmem:[#allocation19 + $0x64] sm:$0xf]
    %v1594 = vld [vmem:[#allocation19 + $0x68] sm:$0xf]
    %v1595 = vld [vmem:[#allocation19 + $0x6c] sm:$0xf]
    %v1596 = vld [vmem:[#allocation19 + $0x70] sm:$0xf]
    %v1597 = vld [vmem:[#allocation19 + $0x74] sm:$0xf]
    %v1598 = vld [vmem:[#allocation19 + $0x78] sm:$0xf]
    %v1599 = vld [vmem:[#allocation19 + $0x7c] sm:$0xf]
    %v1616 = vunpack.c.l.b16 %v1584
    %v1617 = vunpack.c.l.b16 %v1585
    %v1618 = vunpack.c.l.b16 %v1586
    %v1619 = vunpack.c.l.b16 %v1587
    %v1620 = vunpack.c.l.b16 %v1588
    %v1621 = vunpack.c.l.b16 %v1589
    %v1622 = vunpack.c.l.b16 %v1590
    %v1623 = vunpack.c.l.b16 %v1591
    %v1624 = vunpack.c.l.b16 %v1592
    %v1625 = vunpack.c.l.b16 %v1593
    %v1626 = vunpack.c.l.b16 %v1594
    %v1627 = vunpack.c.l.b16 %v1595
    %v1628 = vunpack.c.l.b16 %v1596
    %v1629 = vunpack.c.l.b16 %v1597
    %v1630 = vunpack.c.l.b16 %v1598
    %v1631 = vunpack.c.l.b16 %v1599
    %v1632 = vpack.c.b16 %v1617, %v1616
    %v1633 = vpack.c.b16 %v1619, %v1618
    %v1634 = vpack.c.b16 %v1621, %v1620
    %v1635 = vpack.c.b16 %v1623, %v1622
    %v1636 = vpack.c.b16 %v1625, %v1624
    %v1637 = vpack.c.b16 %v1627, %v1626
    %v1638 = vpack.c.b16 %v1629, %v1628
    %v1639 = vpack.c.b16 %v1631, %v1630
    %1648 = vmatprep.subr.bf16.mxu0 0
    %1649 = vmatpush1.bf16.msra.mxu0 %v1632
    %1650 = vmatprep.subr.bf16.mxu0 0
    %1651 = vmatpush1.bf16.msra.mxu0 %v1633
    %1652 = vmatprep.subr.bf16.mxu0 0
    %1653 = vmatpush1.bf16.msra.mxu0 %v1634
    %1654 = vmatprep.subr.bf16.mxu0 0
    %1655 = vmatpush1.bf16.msra.mxu0 %v1635
    %1656 = vmatprep.subr.bf16.mxu0 0
    %1657 = vmatpush1.bf16.msra.mxu0 %v1636
    %1658 = vmatprep.subr.bf16.mxu0 0
    %1659 = vmatpush1.bf16.msra.mxu0 %v1637
    %1660 = vmatprep.subr.bf16.mxu0 0
    %1661 = vmatpush1.bf16.msra.mxu0 %v1638
    %1662 = vmatprep.subr.bf16.mxu0 0
    %1663 = vmatpush1.bf16.msra.mxu0 %v1639
    %1664 = vmatprep.subr.bf16.mxu0 0
    %1665 = vmatpush1.bf16.msra.mxu0 0
    %1666 = vmatprep.subr.bf16.mxu0 0
    %1667 = vmatpush1.bf16.msra.mxu0 0
    %1668 = vmatprep.subr.bf16.mxu0 0
    %1669 = vmatpush1.bf16.msra.mxu0 0
    %1670 = vmatprep.subr.bf16.mxu0 0
    %1671 = vmatpush1.bf16.msra.mxu0 0
    %1672 = vmatprep.subr.bf16.mxu0 0
    %1673 = vmatpush1.bf16.msra.mxu0 0
    %1674 = vmatprep.subr.bf16.mxu0 0
    %1675 = vmatpush1.bf16.msra.mxu0 0
    %1676 = vmatprep.subr.bf16.mxu0 0
    %1677 = vmatpush1.bf16.msra.mxu0 0
    %1678 = vmatprep.subr.bf16.mxu0 0
    %1679 = vmatpush1.bf16.msra.mxu0 0
    %1680 = vmatprep.mubr.bf16.mxu0 0
    %1681 = vmatmul.mubr.bf16.gmra.mrb[0].mxu0 %v1579
    %v1682 = vpop.f32.mrb[0].mxu0
    %v1683 = vadd.f32 0.0, %v1682
    %v1684 = vpop.f32.mrb[0].mxu0
    %v1685 = vpop.f32.mrb[0].mxu0
    %v1686 = vadd.f32 0.0, %v1685
    %v1687 = vpop.f32.mrb[0].mxu0
    %1688 = vmatprep.mubr.bf16.mxu0 0
    %1689 = vmatmul.mubr.bf16.gmra.mrb[0].mxu0 %v1582
    %v1690 = vpop.f32.mrb[0].mxu0
    %v1691 = vadd.f32 0.0, %v1690
    %v1692 = vpop.f32.mrb[0].mxu0
    %v1693 = vpop.f32.mrb[0].mxu0
    %v1694 = vadd.f32 0.0, %v1693
    %v1695 = vpop.f32.mrb[0].mxu0
    %1696 = vdwg.mxu0
    %v1713 = vunpack.c.l.b16 %v1560
    %v1714 = vunpack.c.l.b16 %v1561
    %v1715 = vunpack.c.l.b16 %v1562
    %v1716 = vunpack.c.l.b16 %v1563
    %v1717 = vunpack.c.l.b16 %v1564
    %v1718 = vunpack.c.l.b16 %v1565
    %v1719 = vunpack.c.l.b16 %v1566
    %v1720 = vunpack.c.l.b16 %v1567
    %v1721 = vunpack.c.l.b16 %v1568
    %v1722 = vunpack.c.l.b16 %v1569
    %v1723 = vunpack.c.l.b16 %v1570
    %v1724 = vunpack.c.l.b16 %v1571
    %v1725 = vunpack.c.l.b16 %v1572
    %v1726 = vunpack.c.l.b16 %v1573
    %v1727 = vunpack.c.l.b16 %v1574
    %v1728 = vunpack.c.l.b16 %v1575
    %v1729 = vpack.c.b16 %v1714, %v1713
    %v1730 = vpack.c.b16 %v1716, %v1715
    %v1731 = vpack.c.b16 %v1718, %v1717
    %v1732 = vpack.c.b16 %v1720, %v1719
    %v1733 = vpack.c.b16 %v1722, %v1721
    %v1734 = vpack.c.b16 %v1724, %v1723
    %v1735 = vpack.c.b16 %v1726, %v1725
    %v1736 = vpack.c.b16 %v1728, %v1727
    %1745 = vmatprep.subr.bf16.mxu0 0
    %1746 = vmatpush1.bf16.msra.mxu0 %v1729
    %1747 = vmatprep.subr.bf16.mxu0 0
    %1748 = vmatpush1.bf16.msra.mxu0 %v1730
    %1749 = vmatprep.subr.bf16.mxu0 0
    %1750 = vmatpush1.bf16.msra.mxu0 %v1731
    %1751 = vmatprep.subr.bf16.mxu0 0
    %1752 = vmatpush1.bf16.msra.mxu0 %v1732
    %1753 = vmatprep.subr.bf16.mxu0 0
    %1754 = vmatpush1.bf16.msra.mxu0 %v1733
    %1755 = vmatprep.subr.bf16.mxu0 0
    %1756 = vmatpush1.bf16.msra.mxu0 %v1734
    %1757 = vmatprep.subr.bf16.mxu0 0
    %1758 = vmatpush1.bf16.msra.mxu0 %v1735
    %1759 = vmatprep.subr.bf16.mxu0 0
    %1760 = vmatpush1.bf16.msra.mxu0 %v1736
    %1761 = vmatprep.subr.bf16.mxu0 0
    %1762 = vmatpush1.bf16.msra.mxu0 0
    %1763 = vmatprep.subr.bf16.mxu0 0
    %1764 = vmatpush1.bf16.msra.mxu0 0
    %1765 = vmatprep.subr.bf16.mxu0 0
    %1766 = vmatpush1.bf16.msra.mxu0 0
    %1767 = vmatprep.subr.bf16.mxu0 0
    %1768 = vmatpush1.bf16.msra.mxu0 0
    %1769 = vmatprep.subr.bf16.mxu0 0
    %1770 = vmatpush1.bf16.msra.mxu0 0
    %1771 = vmatprep.subr.bf16.mxu0 0
    %1772 = vmatpush1.bf16.msra.mxu0 0
    %1773 = vmatprep.subr.bf16.mxu0 0
    %1774 = vmatpush1.bf16.msra.mxu0 0
    %1775 = vmatprep.subr.bf16.mxu0 0
    %1776 = vmatpush1.bf16.msra.mxu0 0
    %1777 = vmatprep.mubr.bf16.mxu0 0
    %1778 = vmatmul.mubr.bf16.gmra.mrb[0].mxu0 %v1555
    %v1779 = vpop.f32.mrb[0].mxu0
    %v1780 = vadd.f32 %v1683, %v1779
    %v1781 = vpop.f32.mrb[0].mxu0
    %v1782 = vpop.f32.mrb[0].mxu0
    %v1783 = vadd.f32 %v1686, %v1782
    %v1784 = vpop.f32.mrb[0].mxu0
    %1785 = vmatprep.mubr.bf16.mxu0 0
    %1786 = vmatmul.mubr.bf16.gmra.mrb[0].mxu0 %v1558
    %v1787 = vpop.f32.mrb[0].mxu0
    %v1788 = vadd.f32 %v1691, %v1787
    %v1789 = vpop.f32.mrb[0].mxu0
    %v1790 = vpop.f32.mrb[0].mxu0
    %v1791 = vadd.f32 %v1694, %v1790
    %v1792 = vpop.f32.mrb[0].mxu0
    %1793 = vdwg.mxu0
    %v1794 = vld [vmem:[#allocation19 + $0x80] sm:$0xf]
    %v1795 = vld [vmem:[#allocation19 + $0x84] sm:$0xf]
    %v1796 = vld [vmem:[#allocation19 + $0x88] sm:$0xf]
    %v1797 = vld [vmem:[#allocation19 + $0x8c] sm:$0xf]
    %v1798 = vld [vmem:[#allocation19 + $0x90] sm:$0xf]
    %v1799 = vld [vmem:[#allocation19 + $0x94] sm:$0xf]
    %v1800 = vld [vmem:[#allocation19 + $0x98] sm:$0xf]
    %v1801 = vld [vmem:[#allocation19 + $0x9c] sm:$0xf]
    %v1802 = vld [vmem:[#allocation19 + $0xa0] sm:$0xf]
    %v1803 = vld [vmem:[#allocation19 + $0xa4] sm:$0xf]
    %v1804 = vld [vmem:[#allocation19 + $0xa8] sm:$0xf]
    %v1805 = vld [vmem:[#allocation19 + $0xac] sm:$0xf]
    %v1806 = vld [vmem:[#allocation19 + $0xb0] sm:$0xf]
    %v1807 = vld [vmem:[#allocation19 + $0xb4] sm:$0xf]
    %v1808 = vld [vmem:[#allocation19 + $0xb8] sm:$0xf]
    %v1809 = vld [vmem:[#allocation19 + $0xbc] sm:$0xf]
    %v1826 = vunpack.c.l.b16 %v1794
    %v1827 = vunpack.c.l.b16 %v1795
    %v1828 = vunpack.c.l.b16 %v1796
    %v1829 = vunpack.c.l.b16 %v1797
    %v1830 = vunpack.c.l.b16 %v1798
    %v1831 = vunpack.c.l.b16 %v1799
    %v1832 = vunpack.c.l.b16 %v1800
    %v1833 = vunpack.c.l.b16 %v1801
    %v1834 = vunpack.c.l.b16 %v1802
    %v1835 = vunpack.c.l.b16 %v1803
    %v1836 = vunpack.c.l.b16 %v1804
    %v1837 = vunpack.c.l.b16 %v1805
    %v1838 = vunpack.c.l.b16 %v1806
    %v1839 = vunpack.c.l.b16 %v1807
    %v1840 = vunpack.c.l.b16 %v1808
    %v1841 = vunpack.c.l.b16 %v1809
    %v1842 = vpack.c.b16 %v1827, %v1826
    %v1843 = vpack.c.b16 %v1829, %v1828
    %v1844 = vpack.c.b16 %v1831, %v1830
    %v1845 = vpack.c.b16 %v1833, %v1832
    %v1846 = vpack.c.b16 %v1835, %v1834
    %v1847 = vpack.c.b16 %v1837, %v1836
    %v1848 = vpack.c.b16 %v1839, %v1838
    %v1849 = vpack.c.b16 %v1841, %v1840
    %1858 = vmatprep.subr.bf16.mxu0 0
    %1859 = vmatpush1.bf16.msra.mxu0 %v1842
    %1860 = vmatprep.subr.bf16.mxu0 0
    %1861 = vmatpush1.bf16.msra.mxu0 %v1843
    %1862 = vmatprep.subr.bf16.mxu0 0
    %1863 = vmatpush1.bf16.msra.mxu0 %v1844
    %1864 = vmatprep.subr.bf16.mxu0 0
    %1865 = vmatpush1.bf16.msra.mxu0 %v1845
    %1866 = vmatprep.subr.bf16.mxu0 0
    %1867 = vmatpush1.bf16.msra.mxu0 %v1846
    %1868 = vmatprep.subr.bf16.mxu0 0
    %1869 = vmatpush1.bf16.msra.mxu0 %v1847
    %1870 = vmatprep.subr.bf16.mxu0 0
    %1871 = vmatpush1.bf16.msra.mxu0 %v1848
    %1872 = vmatprep.subr.bf16.mxu0 0
    %1873 = vmatpush1.bf16.msra.mxu0 %v1849
    %1874 = vmatprep.subr.bf16.mxu0 0
    %1875 = vmatpush1.bf16.msra.mxu0 0
    %1876 = vmatprep.subr.bf16.mxu0 0
    %1877 = vmatpush1.bf16.msra.mxu0 0
    %1878 = vmatprep.subr.bf16.mxu0 0
    %1879 = vmatpush1.bf16.msra.mxu0 0
    %1880 = vmatprep.subr.bf16.mxu0 0
    %1881 = vmatpush1.bf16.msra.mxu0 0
    %1882 = vmatprep.subr.bf16.mxu0 0
    %1883 = vmatpush1.bf16.msra.mxu0 0
    %1884 = vmatprep.subr.bf16.mxu0 0
    %1885 = vmatpush1.bf16.msra.mxu0 0
    %1886 = vmatprep.subr.bf16.mxu0 0
    %1887 = vmatpush1.bf16.msra.mxu0 0
    %1888 = vmatprep.subr.bf16.mxu0 0
    %1889 = vmatpush1.bf16.msra.mxu0 0
    %1890 = vmatprep.mubr.bf16.mxu0 0
    %1891 = vmatmul.mubr.bf16.gmra.mrb[0].mxu0 %v1548
    %v1892 = vpop.f32.mrb[0].mxu0
    %v1893 = vadd.f32 0.0, %v1892
    %v1894 = vpop.f32.mrb[0].mxu0
    %v1895 = vpop.f32.mrb[0].mxu0
    %v1896 = vadd.f32 0.0, %v1895
    %v1897 = vpop.f32.mrb[0].mxu0
    %1898 = vmatprep.mubr.bf16.mxu0 0
    %1899 = vmatmul.mubr.bf16.gmra.mrb[0].mxu0 %v1549
    %v1900 = vpop.f32.mrb[0].mxu0
    %v1901 = vadd.f32 0.0, %v1900
    %v1902 = vpop.f32.mrb[0].mxu0
    %v1903 = vpop.f32.mrb[0].mxu0
    %v1904 = vadd.f32 0.0, %v1903
    %v1905 = vpop.f32.mrb[0].mxu0
    %1906 = vdwg.mxu0
    %v1907 = vadd.f32 %v1780, %v1893
    %v1908 = vadd.f32 %v1783, %v1896
    %v1909 = vadd.f32 %v1788, %v1901
    %v1910 = vadd.f32 %v1791, %v1904
    %v1911 = vld [vmem:[%s13] sm:$0x1]
    %v1913 = vlaneseq
    %v1914 = vshrl.u32 %v1913, 7
    %v1915 = vsub.s32 0, %v1914
    %v1916 = vrot.slane %v1911, %v1915
    %v1918 = vmul.f32 %v1907, %v1916
    %v1919 = vmul.f32 %v1908, %v1916
    %v1920 = vmul.f32 %v1909, %v1916
    %v1921 = vmul.f32 %v1910, %v1916
    %v1922 = vld [vmem:[%s14] sm:$0x1]
    %v1924 = vlaneseq
    %v1925 = vshrl.u32 %v1924, 7
    %v1926 = vsub.s32 0, %v1925
    %v1927 = vrot.slane %v1922, %v1926
    %v1929 = vadd.f32 %v1918, %v1927
    %v1930 = vadd.f32 %v1919, %v1927
    %v1931 = vadd.f32 %v1920, %v1927
    %v1932 = vadd.f32 %v1921, %v1927
    %v1933 = vmax.f32 %v1929, 0.0
    %v1934 = vmax.f32 %v1930, 0.0
    %v1935 = vmax.f32 %v1931, 0.0
    %v1936 = vmax.f32 %v1932, 0.0
    %v1937 = vld [vmem:[#allocation20] sm:$0xf]
    %v1938 = vld [vmem:[#allocation20 + $0x4] sm:$0xf]
    %v1939 = vld [vmem:[#allocation20 + $0x8] sm:$0xf]
    %v1940 = vld [vmem:[#allocation20 + $0xc] sm:$0xf]
    %v1941 = vld [vmem:[#allocation20 + $0x10] sm:$0xf]
    %v1942 = vld [vmem:[#allocation20 + $0x14] sm:$0xf]
    %v1943 = vld [vmem:[#allocation20 + $0x18] sm:$0xf]
    %v1944 = vld [vmem:[#allocation20 + $0x1c] sm:$0xf]
    %v1945 = vld [vmem:[#allocation20 + $0x20] sm:$0xf]
    %v1946 = vld [vmem:[#allocation20 + $0x24] sm:$0xf]
    %v1947 = vld [vmem:[#allocation20 + $0x28] sm:$0xf]
    %v1948 = vld [vmem:[#allocation20 + $0x2c] sm:$0xf]
    %v1949 = vld [vmem:[#allocation20 + $0x30] sm:$0xf]
    %v1950 = vld [vmem:[#allocation20 + $0x34] sm:$0xf]
    %v1951 = vld [vmem:[#allocation20 + $0x38] sm:$0xf]
    %v1952 = vld [vmem:[#allocation20 + $0x3c] sm:$0xf]
    %v1953 = vld [vmem:[%s16] sm:$0x1]
    %v1955 = vlaneseq
    %v1956 = vshrl.u32 %v1955, 7
    %v1957 = vsub.s32 0, %v1956
    %v1958 = vrot.slane %v1953, %v1957
    %v1976 = vunpack.c.l.b16 %v1937
    %v1977 = vunpack.c.l.b16 %v1938
    %v1978 = vunpack.c.l.b16 %v1939
    %v1979 = vunpack.c.l.b16 %v1940
    %v1980 = vunpack.c.l.b16 %v1941
    %v1981 = vunpack.c.l.b16 %v1942
    %v1982 = vunpack.c.l.b16 %v1943
    %v1983 = vunpack.c.l.b16 %v1944
    %v1984 = vunpack.c.l.b16 %v1945
    %v1985 = vunpack.c.l.b16 %v1946
    %v1986 = vunpack.c.l.b16 %v1947
    %v1987 = vunpack.c.l.b16 %v1948
    %v1988 = vunpack.c.l.b16 %v1949
    %v1989 = vunpack.c.l.b16 %v1950
    %v1990 = vunpack.c.l.b16 %v1951
    %v1991 = vunpack.c.l.b16 %v1952
    %v1992 = vpack.c.b16 %v1977, %v1976
    %v1993 = vpack.c.b16 %v1979, %v1978
    %v1994 = vpack.c.b16 %v1981, %v1980
    %v1995 = vpack.c.b16 %v1983, %v1982
    %v1996 = vpack.c.b16 %v1985, %v1984
    %v1997 = vpack.c.b16 %v1987, %v1986
    %v1998 = vpack.c.b16 %v1989, %v1988
    %v1999 = vpack.c.b16 %v1991, %v1990
    %2008 = vmatprep.subr.bf16.mxu0 0
    %2009 = vmatpush1.bf16.msra.mxu0 %v1992
    %2010 = vmatprep.subr.bf16.mxu0 0
    %2011 = vmatpush1.bf16.msra.mxu0 %v1993
    %2012 = vmatprep.subr.bf16.mxu0 0
    %2013 = vmatpush1.bf16.msra.mxu0 %v1994
    %2014 = vmatprep.subr.bf16.mxu0 0
    %2015 = vmatpush1.bf16.msra.mxu0 %v1995
    %2016 = vmatprep.subr.bf16.mxu0 0
    %2017 = vmatpush1.bf16.msra.mxu0 %v1996
    %2018 = vmatprep.subr.bf16.mxu0 0
    %2019 = vmatpush1.bf16.msra.mxu0 %v1997
    %2020 = vmatprep.subr.bf16.mxu0 0
    %2021 = vmatpush1.bf16.msra.mxu0 %v1998
    %2022 = vmatprep.subr.bf16.mxu0 0
    %2023 = vmatpush1.bf16.msra.mxu0 %v1999
    %2024 = vmatprep.subr.bf16.mxu0 0
    %2025 = vmatpush1.bf16.msra.mxu0 0
    %2026 = vmatprep.subr.bf16.mxu0 0
    %2027 = vmatpush1.bf16.msra.mxu0 0
    %2028 = vmatprep.subr.bf16.mxu0 0
    %2029 = vmatpush1.bf16.msra.mxu0 0
    %2030 = vmatprep.subr.bf16.mxu0 0
    %2031 = vmatpush1.bf16.msra.mxu0 0
    %2032 = vmatprep.subr.bf16.mxu0 0
    %2033 = vmatpush1.bf16.msra.mxu0 0
    %2034 = vmatprep.subr.bf16.mxu0 0
    %2035 = vmatpush1.bf16.msra.mxu0 0
    %2036 = vmatprep.subr.bf16.mxu0 0
    %2037 = vmatpush1.bf16.msra.mxu0 0
    %2038 = vmatprep.subr.bf16.mxu0 0
    %2039 = vmatpush1.bf16.msra.mxu0 0
    %2040 = vmatprep.mubr.bf16.mxu0 0
    %2041 = vmatmul.mubr.bf16.gmra.mrb[0].mxu0 %v1158
    %v2042 = vpop.f32.mrb[0].mxu0
    %v2043 = vadd.f32 %v1958, %v2042
    %v2044 = vpop.f32.mrb[0].mxu0
    %v2045 = vpop.f32.mrb[0].mxu0
    %v2046 = vadd.f32 %v1958, %v2045
    %v2047 = vpop.f32.mrb[0].mxu0
    %2048 = vmatprep.mubr.bf16.mxu0 0
    %2049 = vmatmul.mubr.bf16.gmra.mrb[0].mxu0 %v1159
    %v2050 = vpop.f32.mrb[0].mxu0
    %v2051 = vadd.f32 %v1958, %v2050
    %v2052 = vpop.f32.mrb[0].mxu0
    %v2053 = vpop.f32.mrb[0].mxu0
    %v2054 = vadd.f32 %v1958, %v2053
    %v2055 = vpop.f32.mrb[0].mxu0
    %2056 = vdwg.mxu0
    %v2057 = vadd.f32 %v1933, %v2043
    %v2058 = vadd.f32 %v1934, %v2046
    %v2059 = vadd.f32 %v1935, %v2051
    %v2060 = vadd.f32 %v1936, %v2054
    %v2061 = vmax.f32 %v2057, 0.0
    %v2062 = vmax.f32 %v2058, 0.0
    %v2063 = vmax.f32 %v2059, 0.0
    %v2064 = vmax.f32 %v2060, 0.0
    %v2065 = vpack.c.bf16 %v2062, %v2061
    %v2066 = vpack.c.bf16 %v2064, %v2063
    %v2069 = vrot.slane %v2065, 4
    %v2070 = vrot.slane %v2066, 4
    %v2073 = vunpack.c.l.bf16 %v2069
    %v2074 = vunpack.c.l.bf16 %v2070
    %v2075 = vld [vmem:[%s17] sm:$0xff]
    %v2076 = vld [vmem:[%s17 + $0x8] sm:$0xff]
    %v2077 = vld [vmem:[%s17 + $0x10] sm:$0xff]
    %v2078 = vld [vmem:[%s17 + $0x18] sm:$0xff]
    %v2079 = vld [vmem:[%s17 + $0x20] sm:$0xff]
    %v2080 = vld [vmem:[%s17 + $0x28] sm:$0xff]
    %v2081 = vld [vmem:[%s17 + $0x30] sm:$0xff]
    %v2082 = vld [vmem:[%s17 + $0x38] sm:$0xff]
    %v2083 = vld [vmem:[%s17 + $0x40] sm:$0xff]
    %v2084 = vld [vmem:[%s17 + $0x48] sm:$0xff]
    %v2085 = vld [vmem:[%s17 + $0x50] sm:$0xff]
    %v2086 = vld [vmem:[%s17 + $0x58] sm:$0xff]
    %v2087 = vld [vmem:[%s17 + $0x60] sm:$0xff]
    %v2088 = vld [vmem:[%s17 + $0x68] sm:$0xff]
    %v2089 = vld [vmem:[%s17 + $0x70] sm:$0xff]
    %v2090 = vld [vmem:[%s17 + $0x78] sm:$0xff]
    %v2091 = vld [vmem:[%s18] sm:$0x1]
    %v2093 = vlaneseq
    %v2094 = vshrl.u32 %v2093, 7
    %v2095 = vsub.s32 0, %v2094
    %v2096 = vrot.slane %v2091, %v2095
    %v2100 = vrot.slane %v2073, 7
    %v2101 = vrot.slane %v2074, 6
    %vm2102 = vcmask 1041409
    %v2103 = vsel %vm2102, %v2101, %v2100
    %2105 = vmatprep.subr.mxu0 0.0
    %2106 = vmatpush1.msra.mxu0 %v2075
    %2107 = vmatprep.subr.mxu0 0.0
    %2108 = vmatpush1.msra.mxu0 %v2076
    %2109 = vmatprep.subr.mxu0 0.0
    %2110 = vmatpush1.msra.mxu0 %v2077
    %2111 = vmatprep.subr.mxu0 0.0
    %2112 = vmatpush1.msra.mxu0 %v2078
    %2113 = vmatprep.subr.mxu0 0.0
    %2114 = vmatpush1.msra.mxu0 %v2079
    %2115 = vmatprep.subr.mxu0 0.0
    %2116 = vmatpush1.msra.mxu0 %v2080
    %2117 = vmatprep.subr.mxu0 0.0
    %2118 = vmatpush1.msra.mxu0 %v2081
    %2119 = vmatprep.subr.mxu0 0.0
    %2120 = vmatpush1.msra.mxu0 %v2082
    %2121 = vmatprep.subr.mxu0 0.0
    %2122 = vmatpush1.msra.mxu0 %v2083
    %2123 = vmatprep.subr.mxu0 0.0
    %2124 = vmatpush1.msra.mxu0 %v2084
    %2125 = vmatprep.subr.mxu0 0.0
    %2126 = vmatpush1.msra.mxu0 %v2085
    %2127 = vmatprep.subr.mxu0 0.0
    %2128 = vmatpush1.msra.mxu0 %v2086
    %2129 = vmatprep.subr.mxu0 0.0
    %2130 = vmatpush1.msra.mxu0 %v2087
    %2131 = vmatprep.subr.mxu0 0.0
    %2132 = vmatpush1.msra.mxu0 %v2088
    %2133 = vmatprep.subr.mxu0 0.0
    %2134 = vmatpush1.msra.mxu0 %v2089
    %2135 = vmatprep.subr.mxu0 0.0
    %2136 = vmatpush1.msra.mxu0 %v2090
    %2137 = vmatprep.subr.mxu0 0.0
    %2138 = vmatpush1.msra.mxu0 0.0
    %2139 = vmatprep.subr.mxu0 0.0
    %2140 = vmatpush1.msra.mxu0 0.0
    %2141 = vmatprep.subr.mxu0 0.0
    %2142 = vmatpush1.msra.mxu0 0.0
    %2143 = vmatprep.subr.mxu0 0.0
    %2144 = vmatpush1.msra.mxu0 0.0
    %2145 = vmatprep.subr.mxu0 0.0
    %2146 = vmatpush1.msra.mxu0 0.0
    %2147 = vmatprep.subr.mxu0 0.0
    %2148 = vmatpush1.msra.mxu0 0.0
    %2149 = vmatprep.subr.mxu0 0.0
    %2150 = vmatpush1.msra.mxu0 0.0
    %2151 = vmatprep.subr.mxu0 0.0
    %2152 = vmatpush1.msra.mxu0 0.0
    %2153 = vmatprep.subr.mxu0 0.0
    %2154 = vmatpush1.msra.mxu0 0.0
    %2155 = vmatprep.subr.mxu0 0.0
    %2156 = vmatpush1.msra.mxu0 0.0
    %2157 = vmatprep.subr.mxu0 0.0
    %2158 = vmatpush1.msra.mxu0 0.0
    %2159 = vmatprep.subr.mxu0 0.0
    %2160 = vmatpush1.msra.mxu0 0.0
    %2161 = vmatprep.subr.mxu0 0.0
    %2162 = vmatpush1.msra.mxu0 0.0
    %2163 = vmatprep.subr.mxu0 0.0
    %2164 = vmatpush1.msra.mxu0 0.0
    %2165 = vmatprep.subr.mxu0 0.0
    %2166 = vmatpush1.msra.mxu0 0.0
    %2167 = vmatprep.subr.mxu0 0.0
    %2168 = vmatpush1.msra.mxu0 0.0
    %2169 = vmatprep.mubr.f32.mxu0 0.0
    %2170 = vmatmul.mubr.f32.gmra.mrb[0].mxu0 %v2103
    %v2171 = vpop.f32.mrb[0].mxu0
    %v2172 = vadd.f32 %v2096, %v2171
    %v2173 = vpop.f32.mrb[0].mxu0
    %2174 = vdwg.mxu0
    %2175 = vst [vmem:[#allocation22] sm:$0x3] %v2172
    // Predicated region
    $region126: #{_lambda_.1} parent=1 // pred_check
      _
    $region127: #{_lambda_.1} parent=1 // pred_check_branch
      %2177 = sbr.rel (0) target = $region129
    $region128: #{_lambda_.1} parent=1 // pred_region
      %s2179 = ssub.s32 32, 32
      %2180 = vsyncadd [#allocation4], %s2179
      %s2182 = sshll.u32 [#allocation22], 4
      %s2183 = int_to_ptr.vmem [resolvable:$true] %s2182
      %2185 = dma.vmem_to_hbm [thread:$0]  %s2183, 32, %s19, [#allocation4]
    $region129: #{_lambda_.1} parent=1 // pred_fallthru
      _
    // Predicated region
    $region130: #{_lambda_.1} parent=1 // pred_check
      _
    $region131: #{_lambda_.1} parent=1 // pred_check_branch
      %2187 = sbr.rel (0) target = $region133
    $region132: #{_lambda_.1} parent=1 // pred_region
      %2188 = dma.done [#allocation4], 32
    $region133: #{_lambda_.1} parent=1 // pred_fallthru
      _
    %2189 = vsyncpa [#allocation3], 1
    %2190 = vsyncpa [#allocation6], 1
    %2191 = vsyncpa [#allocation9], 1
    %2192 = vsyncpa [#allocation12], 1
    %2193 = vsyncpa [#allocation15], 1
    %2194 = vsyncpa [#allocation18], 1
    %2195 = vsyncpa [#allocation21], 1
    %2196 = vsyncpa [#allocation4], 1

</llo_original>
